<compile_context>
chip_gen: v7x
topology: tpu7x:2x2x1
jax: 0.10.0
libtpu: 0.0.40
codegen_flags: <defaults>
</compile_context>

<pallas_src>
import math
from functools import partial

import jax
import jax.numpy as jnp
from jax.experimental import pallas as pl
from jax.experimental.pallas import tpu as pltpu


def _round_up(x, m):
    return (x + m - 1) // m * m


def _make_conv_kernel(KH, KW, Wrow, Sout, Cin_pad, imgs):
    """Fused im2col + single-matmul dense convolution (`imgs` images per step).

    x_ref : (imgs, Cin_pad, Lin_pad) bf16 padded images, rows padded to Wrow lanes
    w_ref : (Cout, K)                bf16 weights, tap-major then channel
    b_ref : (Cout, 1)                f32 bias
    o_ref : (imgs, Cout, Sout)       dense "wide" flat output (f32)
    p_ref : (K, imgs*Sout)           bf16 VMEM scratch: im2col patch matrix
    """

    def conv_kernel(x_ref, w_ref, b_ref, o_ref, p_ref):
        # Build the patch matrix: P[t*Cin_pad + c, i*Sout + j] =
        #   x[i, c, j + kh*Wrow + kw]  with tap t = kh*KW + kw.
        # kh*Wrow is lane-aligned (Wrow % 128 == 0); only kw != 0 rotates lanes.
        # Each write is an 8-sublane, (multiple of 128)-lane slab.
        # TODO(synk): with bf16 the native sublane tile is 16, so padding Cin to
        # 16 (instead of 8) would make these writes fully unmasked tile stores.
        for i in range(imgs):
            for kh in range(KH):
                for kw in range(KW):
                    t = kh * KW + kw
                    off = kh * Wrow + kw
                    p_ref[t * Cin_pad:(t + 1) * Cin_pad,
                          i * Sout:(i + 1) * Sout] = x_ref[i, :, pl.ds(off, Sout)]

        # One fused MXU matmul over ALL images in this step (K-deep contraction,
        # imgs*Sout lanes), f32 accumulation, single bias add on the VPU.
        acc = jnp.dot(w_ref[...], p_ref[...], preferred_element_type=jnp.float32)
        acc = acc + b_ref[...]

        # Lane-dense stores (Sout is a multiple of 128), no tail branch.
        for i in range(imgs):
            o_ref[i, :, :] = acc[:, i * Sout:(i + 1) * Sout].astype(o_ref.dtype)

    return conv_kernel


@partial(jax.jit, static_argnames=("stride",))
def conv_layer_forward(x_nchw, weight_oihw, bias, *, stride):
    """Forward of PyTorch ConvLayer: ReflectionPad2d(k//2) then Conv2d(stride)."""
    N, Cin, H, W = x_nchw.shape
    Cout, Cin_w, KH, KW = weight_oihw.shape
    assert Cin == Cin_w and KH == KW
    pad = KH // 2

    # ---- static geometry ---------------------------------------------------
    Hp, Wp = H + 2 * pad, W + 2 * pad
    Hd, Wd = Hp - KH + 1, Wp - KW + 1          # dense (stride=1) output size
    Ho = (Hp - KH) // stride + 1               # strided output size
    Wo = (Wp - KW) // stride + 1

    Cin_pad = max(8, _round_up(Cin, 8))        # full-sublane tap slabs
    Wrow = _round_up(Wp, 128)                  # lane-aligned row pitch
    Sout = Hd * Wrow                           # wide output lanes (mult. of 128)
    # Enough input lanes for the deepest tap of the last wide column, rounded up
    # so no in-kernel tail/bounds handling is needed (VMEM refs have no OOB check).
    Lin_pad = _round_up(Hp * Wrow + KW - 1, 128)
    K = KH * KW * Cin_pad

    # Two "parallel" grid steps so both v7x TensorCores get work; each step's
    # batch share is folded into the lane dim of one matmul.
    # TODO(synk): on single-TensorCore chips (v5e/v6e) n_steps=1 amortizes the
    # per-step overhead slightly better.
    n_steps = 2 if N >= 2 else 1
    imgs = -(-N // n_steps)                    # images per grid step
    N_pad = n_steps * imgs

    # ---- wrapper glue: reflection pad + layout padding + bf16 cast ----------
    xp = jnp.pad(x_nchw, ((0, 0), (0, 0), (pad, pad), (pad, pad)), mode="reflect")
    xp = jnp.pad(xp, ((0, N_pad - N), (0, Cin_pad - Cin), (0, 0), (0, Wrow - Wp)))
    x_flat = xp.reshape(N_pad, Cin_pad, Hp * Wrow)
    x_flat = jnp.pad(x_flat, ((0, 0), (0, 0), (0, Lin_pad - Hp * Wrow)))
    x_flat = x_flat.astype(jnp.bfloat16)

    w_pad = jnp.pad(weight_oihw, ((0, 0), (0, Cin_pad - Cin), (0, 0), (0, 0)))
    w_mat = jnp.transpose(w_pad, (0, 2, 3, 1)).reshape(Cout, K).astype(jnp.bfloat16)
    b_col = bias.astype(jnp.float32).reshape(Cout, 1)

    kernel = _make_conv_kernel(KH, KW, Wrow, Sout, Cin_pad, imgs)

    # Per-step VMEM: ~0.5 MB (input + output double buffers + bf16 P scratch),
    # comfortably under every generation's default scoped limit.
    # TODO(synk): for large images add an output-row tile axis with halo'd input
    # blocks and budget the K x Sout_tile P scratch against v7x's 64 MiB VMEM
    # (set vmem_limit_bytes explicitly; plan ~half the tile height of v6e).
    out_flat = pl.pallas_call(
        kernel,
        out_shape=jax.ShapeDtypeStruct((N_pad, Cout, Sout), jnp.float32),
        grid=(n_steps,),
        in_specs=[
            pl.BlockSpec((imgs, Cin_pad, Lin_pad), lambda s: (s, 0, 0)),
            pl.BlockSpec((Cout, K), lambda s: (0, 0)),
            pl.BlockSpec((Cout, 1), lambda s: (0, 0)),
        ],
        out_specs=pl.BlockSpec((imgs, Cout, Sout), lambda s: (s, 0, 0)),
        scratch_shapes=[pltpu.VMEM((K, imgs * Sout), jnp.bfloat16)],
        compiler_params=pltpu.CompilerParams(dimension_semantics=("parallel",)),
    )(x_flat, w_mat, b_col)

    # Free reshape, crop the padded columns, decimate for stride>1, drop batch pad.
    out = out_flat.reshape(N_pad, Cout, Hd, Wrow)
    out = out[:N, :, ::stride, 0:Wd:stride]
    assert out.shape == (N, Cout, Ho, Wo)
    return out.astype(x_nchw.dtype)


def _reference(x_nchw, weight_oihw, bias, stride):
    pad = weight_oihw.shape[-1] // 2
    xp = jnp.pad(x_nchw, ((0, 0), (0, 0), (pad, pad), (pad, pad)), mode="reflect")
    out = jax.lax.conv_general_dilated(
        xp, weight_oihw, window_strides=(stride, stride), padding="VALID",
        dimension_numbers=("NCHW", "OIHW", "NCHW"),
        precision=jax.lax.Precision.HIGHEST)
    return out + bias[None, :, None, None]


if __name__ == "__main__":
    # Module config: ConvLayer(in_channels=4, out_channels=8, kernel_size=3, stride=1)
    in_channels, out_channels, kernel_size, stride = 4, 8, 3, 1
    N, H, W = 2, 16, 16

    key = jax.random.PRNGKey(0)
    kx, kwt, kb = jax.random.split(key, 3)

    # Deterministic parameter init (Conv2d-style uniform(-1/sqrt(fan_in), ...)).
    fan_in = in_channels * kernel_size * kernel_size
    bound = 1.0 / math.sqrt(fan_in)
    weight = jax.random.uniform(
        kwt, (out_channels, in_channels, kernel_size, kernel_size),
        minval=-bound, maxval=bound, dtype=jnp.float32)               # OIHW
    bias = jax.random.uniform(kb, (out_channels,), minval=-bound,
                              maxval=bound, dtype=jnp.float32)

    x = jax.random.normal(kx, (N, in_channels, H, W), dtype=jnp.float32)  # NCHW

    out = jax.block_until_ready(conv_layer_forward(x, weight, bias, stride=stride))

    ref = jax.block_until_ready(_reference(x, weight, bias, stride))
    assert out.shape == ref.shape, (out.shape, ref.shape)

    # Tight check vs. a matched-precision reference (bf16-rounded operands,
    # f32 accumulation) — this is the real correctness gate for the kernel.
    x_bf = x.astype(jnp.bfloat16).astype(jnp.float32)
    w_bf = weight.astype(jnp.bfloat16).astype(jnp.float32)
    ref_bf = jax.block_until_ready(_reference(x_bf, w_bf, bias, stride))
    err_matched = float(jnp.max(jnp.abs(out - ref_bf)))
    assert err_matched < 1e-3, f"matched-precision max abs error {err_matched}"

    # Loose check vs. the full-f32 reference; tolerance deliberately widened for
    # bf16 operands (f32 accumulation keeps it well inside this bound).
    err_f32 = float(jnp.max(jnp.abs(out - ref)))
    assert err_f32 < 5e-2, f"f32-reference max abs error {err_f32}"

    print("KERNEL_OK")
</pallas_src>

<mosaic_0001>
module attributes {stable_mosaic.version = 11 : i64} {
  func.func @conv_kernel(%arg0: i32, %arg1: memref<1x8x2432xbf16, #tpu.memory_space<vmem>>, %arg2: memref<8x72xbf16, #tpu.memory_space<vmem>>, %arg3: memref<8x1xf32, #tpu.memory_space<vmem>>, %arg4: memref<1x8x2048xf32, #tpu.memory_space<vmem>>, %arg5: memref<72x2048xbf16, #tpu.memory_space<vmem>>) attributes {dimension_semantics = [#tpu.dimension_semantics<parallel>], iteration_bounds = array<i64: 2>, scalar_prefetch = 0 : i64, scratch_operands = 1 : i64, tpu.core_type = #tpu.core_type<tc>, window_params = [{transform_indices = @transform_0, window_bounds = array<i64: 1, 8, 2432>}, {pipeline_mode = #tpu.pipeline_mode<synchronous>, transform_indices = @transform_1, window_bounds = array<i64: 8, 72>}, {pipeline_mode = #tpu.pipeline_mode<synchronous>, transform_indices = @transform_2, window_bounds = array<i64: 8, 1>}, {transform_indices = @transform_3, window_bounds = array<i64: 1, 8, 2048>}]} {
    %c0 = arith.constant 0 : index
    %c0_0 = arith.constant 0 : index
    %c0_1 = arith.constant 0 : index
    %0 = vector.load %arg1[%c0, %c0_0, %c0_1] : memref<1x8x2432xbf16, #tpu.memory_space<vmem>>, vector<1x8x2048xbf16>
    %1 = vector.shape_cast %0 : vector<1x8x2048xbf16> to vector<8x2048xbf16>
    %c0_2 = arith.constant 0 : index
    %c0_3 = arith.constant 0 : index
    %2 = vector.load %arg5[%c0_2, %c0_3] : memref<72x2048xbf16, #tpu.memory_space<vmem>>, vector<8x2048xbf16>
    tpu.vector_store %arg5[%c0_2, %c0_3], %1 {strides = array<i32>} : memref<72x2048xbf16, #tpu.memory_space<vmem>>, vector<8x2048xbf16>,
    %c0_4 = arith.constant 0 : index
    %c0_5 = arith.constant 0 : index
    %c1 = arith.constant 1 : index
    %3 = vector.load %arg1[%c0_4, %c0_5, %c1] : memref<1x8x2432xbf16, #tpu.memory_space<vmem>>, vector<1x8x2048xbf16>
    %4 = vector.shape_cast %3 : vector<1x8x2048xbf16> to vector<8x2048xbf16>
    %c8 = arith.constant 8 : index
    %c0_6 = arith.constant 0 : index
    %5 = vector.load %arg5[%c8, %c0_6] : memref<72x2048xbf16, #tpu.memory_space<vmem>>, vector<8x2048xbf16>
    tpu.vector_store %arg5[%c8, %c0_6], %4 {strides = array<i32>} : memref<72x2048xbf16, #tpu.memory_space<vmem>>, vector<8x2048xbf16>,
    %c0_7 = arith.constant 0 : index
    %c0_8 = arith.constant 0 : index
    %c2 = arith.constant 2 : index
    %6 = vector.load %arg1[%c0_7, %c0_8, %c2] : memref<1x8x2432xbf16, #tpu.memory_space<vmem>>, vector<1x8x2048xbf16>
    %7 = vector.shape_cast %6 : vector<1x8x2048xbf16> to vector<8x2048xbf16>
    %c16 = arith.constant 16 : index
    %c0_9 = arith.constant 0 : index
    %8 = vector.load %arg5[%c16, %c0_9] : memref<72x2048xbf16, #tpu.memory_space<vmem>>, vector<8x2048xbf16>
    tpu.vector_store %arg5[%c16, %c0_9], %7 {strides = array<i32>} : memref<72x2048xbf16, #tpu.memory_space<vmem>>, vector<8x2048xbf16>,
    %c0_10 = arith.constant 0 : index
    %c0_11 = arith.constant 0 : index
    %c128 = arith.constant 128 : index
    %9 = vector.load %arg1[%c0_10, %c0_11, %c128] : memref<1x8x2432xbf16, #tpu.memory_space<vmem>>, vector<1x8x2048xbf16>
    %10 = vector.shape_cast %9 : vector<1x8x2048xbf16> to vector<8x2048xbf16>
    %c24 = arith.constant 24 : index
    %c0_12 = arith.constant 0 : index
    %11 = vector.load %arg5[%c24, %c0_12] : memref<72x2048xbf16, #tpu.memory_space<vmem>>, vector<8x2048xbf16>
    tpu.vector_store %arg5[%c24, %c0_12], %10 {strides = array<i32>} : memref<72x2048xbf16, #tpu.memory_space<vmem>>, vector<8x2048xbf16>,
    %c0_13 = arith.constant 0 : index
    %c0_14 = arith.constant 0 : index
    %c129 = arith.constant 129 : index
    %12 = vector.load %arg1[%c0_13, %c0_14, %c129] : memref<1x8x2432xbf16, #tpu.memory_space<vmem>>, vector<1x8x2048xbf16>
    %13 = vector.shape_cast %12 : vector<1x8x2048xbf16> to vector<8x2048xbf16>
    %c32 = arith.constant 32 : index
    %c0_15 = arith.constant 0 : index
    %14 = vector.load %arg5[%c32, %c0_15] : memref<72x2048xbf16, #tpu.memory_space<vmem>>, vector<8x2048xbf16>
    tpu.vector_store %arg5[%c32, %c0_15], %13 {strides = array<i32>} : memref<72x2048xbf16, #tpu.memory_space<vmem>>, vector<8x2048xbf16>,
    %c0_16 = arith.constant 0 : index
    %c0_17 = arith.constant 0 : index
    %c130 = arith.constant 130 : index
    %15 = vector.load %arg1[%c0_16, %c0_17, %c130] : memref<1x8x2432xbf16, #tpu.memory_space<vmem>>, vector<1x8x2048xbf16>
    %16 = vector.shape_cast %15 : vector<1x8x2048xbf16> to vector<8x2048xbf16>
    %c40 = arith.constant 40 : index
    %c0_18 = arith.constant 0 : index
    %17 = vector.load %arg5[%c40, %c0_18] : memref<72x2048xbf16, #tpu.memory_space<vmem>>, vector<8x2048xbf16>
    tpu.vector_store %arg5[%c40, %c0_18], %16 {strides = array<i32>} : memref<72x2048xbf16, #tpu.memory_space<vmem>>, vector<8x2048xbf16>,
    %c0_19 = arith.constant 0 : index
    %c0_20 = arith.constant 0 : index
    %c256 = arith.constant 256 : index
    %18 = vector.load %arg1[%c0_19, %c0_20, %c256] : memref<1x8x2432xbf16, #tpu.memory_space<vmem>>, vector<1x8x2048xbf16>
    %19 = vector.shape_cast %18 : vector<1x8x2048xbf16> to vector<8x2048xbf16>
    %c48 = arith.constant 48 : index
    %c0_21 = arith.constant 0 : index
    %20 = vector.load %arg5[%c48, %c0_21] : memref<72x2048xbf16, #tpu.memory_space<vmem>>, vector<8x2048xbf16>
    tpu.vector_store %arg5[%c48, %c0_21], %19 {strides = array<i32>} : memref<72x2048xbf16, #tpu.memory_space<vmem>>, vector<8x2048xbf16>,
    %c0_22 = arith.constant 0 : index
    %c0_23 = arith.constant 0 : index
    %c257 = arith.constant 257 : index
    %21 = vector.load %arg1[%c0_22, %c0_23, %c257] : memref<1x8x2432xbf16, #tpu.memory_space<vmem>>, vector<1x8x2048xbf16>
    %22 = vector.shape_cast %21 : vector<1x8x2048xbf16> to vector<8x2048xbf16>
    %c56 = arith.constant 56 : index
    %c0_24 = arith.constant 0 : index
    %23 = vector.load %arg5[%c56, %c0_24] : memref<72x2048xbf16, #tpu.memory_space<vmem>>, vector<8x2048xbf16>
    tpu.vector_store %arg5[%c56, %c0_24], %22 {strides = array<i32>} : memref<72x2048xbf16, #tpu.memory_space<vmem>>, vector<8x2048xbf16>,
    %c0_25 = arith.constant 0 : index
    %c0_26 = arith.constant 0 : index
    %c258 = arith.constant 258 : index
    %24 = vector.load %arg1[%c0_25, %c0_26, %c258] : memref<1x8x2432xbf16, #tpu.memory_space<vmem>>, vector<1x8x2048xbf16>
    %25 = vector.shape_cast %24 : vector<1x8x2048xbf16> to vector<8x2048xbf16>
    %c64 = arith.constant 64 : index
    %c0_27 = arith.constant 0 : index
    %26 = vector.load %arg5[%c64, %c0_27] : memref<72x2048xbf16, #tpu.memory_space<vmem>>, vector<8x2048xbf16>
    tpu.vector_store %arg5[%c64, %c0_27], %25 {strides = array<i32>} : memref<72x2048xbf16, #tpu.memory_space<vmem>>, vector<8x2048xbf16>,
    %c0_28 = arith.constant 0 : index
    %c0_29 = arith.constant 0 : index
    %27 = vector.load %arg2[%c0_28, %c0_29] : memref<8x72xbf16, #tpu.memory_space<vmem>>, vector<8x72xbf16>
    %c0_30 = arith.constant 0 : index
    %c0_31 = arith.constant 0 : index
    %28 = vector.load %arg5[%c0_30, %c0_31] : memref<72x2048xbf16, #tpu.memory_space<vmem>>, vector<72x2048xbf16>
    %cst = arith.constant dense<0.000000e+00> : vector<8x2048xf32>
    %29 = tpu.matmul %27, %28, %cst {dimension_numbers = #tpu.dot_dimension_numbers<[1], [0], [0], [1], [0, 0, 1, 1], [], []>} : vector<8x72xbf16>, vector<72x2048xbf16>, vector<8x2048xf32> -> vector<8x2048xf32>
    %c0_32 = arith.constant 0 : index
    %c0_33 = arith.constant 0 : index
    %30 = vector.load %arg3[%c0_32, %c0_33] : memref<8x1xf32, #tpu.memory_space<vmem>>, vector<8x1xf32>
    %31 = vector.broadcast %30 : vector<8x1xf32> to vector<8x2048xf32>
    %32 = arith.addf %29, %31 : vector<8x2048xf32>
    %c0_34 = arith.constant 0 : index
    %c0_35 = arith.constant 0 : index
    %c0_36 = arith.constant 0 : index
    %33 = vector.load %arg4[%c0_34, %c0_35, %c0_36] : memref<1x8x2048xf32, #tpu.memory_space<vmem>>, vector<1x8x2048xf32>
    %34 = vector.shape_cast %33 : vector<1x8x2048xf32> to vector<8x2048xf32>
    %35 = vector.shape_cast %32 : vector<8x2048xf32> to vector<1x8x2048xf32>
    tpu.vector_store %arg4[%c0_34, %c0_35, %c0_36], %35 {strides = array<i32>} : memref<1x8x2048xf32, #tpu.memory_space<vmem>>, vector<1x8x2048xf32>,
    return
  }
  func.func @transform_0(%arg0: i32) -> (i32, i32, i32) {
    %c0_i32 = arith.constant 0 : i32
    %c0_i32_0 = arith.constant 0 : i32
    %c0_i32_1 = arith.constant 0 : i32
    return %arg0, %c0_i32, %c0_i32_0 : i32, i32, i32
  }
  func.func @transform_1(%arg0: i32) -> (i32, i32) {
    %c0_i32 = arith.constant 0 : i32
    %c0_i32_0 = arith.constant 0 : i32
    %c0_i32_1 = arith.constant 0 : i32
    return %c0_i32, %c0_i32_0 : i32, i32
  }
  func.func @transform_2(%arg0: i32) -> (i32, i32) {
    %c0_i32 = arith.constant 0 : i32
    %c0_i32_0 = arith.constant 0 : i32
    %c0_i32_1 = arith.constant 0 : i32
    return %c0_i32, %c0_i32_0 : i32, i32
  }
  func.func @transform_3(%arg0: i32) -> (i32, i32, i32) {
    %c0_i32 = arith.constant 0 : i32
    %c0_i32_0 = arith.constant 0 : i32
    %c0_i32_1 = arith.constant 0 : i32
    return %arg0, %c0_i32, %c0_i32_0 : i32, i32, i32
  }
}

</mosaic_0001>

<llo_original>
// kernel: conv_layer_forward.1
$region0: #{conv_layer_forward.1}
  #allocation0 [shape = 'u32[]', space=smem, size = 0x4, offset = 0x4, fixed_abs, tag = 'smem constant byte address 0x4 - core index']
  #allocation1 [shape = 'u32[144,128]{1,0:T(1,128)}', space=vmem, size = 0x12000, scoped, tag = 'internal scratch']
  #allocation2 [shape = 'bf16[72,2048]{1,0:T(8,128)(2,1)}', space=vmem, size = 0x48000, scoped, tag = 'scratch operand']
  %s0 = inlined_call_operand.vmem [shape: bf16[2,8,2432], index: 0, kind: input, shape index: {}]
  %s1 = inlined_call_operand.vmem [shape: bf16[8,72], index: 1, kind: input, shape index: {}]
  %s2 = inlined_call_operand.vmem [shape: f32[8,1], index: 2, kind: input, shape index: {}]
  %s3 = inlined_call_operand.vmem [shape: f32[2,8,2048], index: 3, kind: output, shape index: {}]
  %s4 = sld [smem:[#allocation0]]
  $region45: #{conv_layer_forward.1} parent=0
    _
  %s6 = ssub.s32 1, %s4
  %s7 = scalar_select 0, %s6, %s4
  loop: start=0, step=1, limit=4
  $region2: #{conv_layer_forward.1} parent=0 // loop_pre_header
    _
  $region3: #{conv_layer_forward.1} parent=0 // loop_header
    %s9 = sphi 0, %s13
    %p10 = scmp.ge.s32.totalorder %s9, 4
    %s19 = sphi 0, %s21
    %s22 = sphi 0, %s19
    %s23 = sphi 0, %s22
    %s39 = sphi 0, %s23
    %s43 = sphi 0, %s43
    %s45 = sphi 0, %s43
    %s46 = sphi 0, %s45
    %s60 = sphi 0, %s46
    %s64 = sphi 0, %s64
    %s66 = sphi 0, %s64
    %s67 = sphi 0, %s66
    %s81 = sphi 0, %s67
    %s87 = sphi 0, %s89
    %s90 = sphi 0, %s87
    %s91 = sphi 0, %s90
    %s107 = sphi 0, %s91
  $region4: #{conv_layer_forward.1} parent=0 // loop_header_branch
    %12 = sbr.rel (%p10) target = $region8
  $region5: #{conv_layer_forward.1} parent=0 // loop_body
    %s14 = ssub.s32 %s9, 1
    %s15 = ssub.s32 %s9, 2
    %s16 = sadd.s32 %s9, 1
    %s17 = ssub.s32 %s9, %s16
    %p18 = scmp.eq.s32.totalorder %s17, 0
    %s20 = sadd.s32 %s19, 1
    %s21 = scalar_select %p18, %s19, %s20
    %p24 = pneg %p18
    %p25 = scmp.eq.s32.totalorder %s9, 1
    %p26 = por %p24, %p25
    %p27 = scmp.ne.s32.totalorder %s19, %s22
    %p28 = scmp.eq.s32.totalorder %s9, 0
    %p29 = por %p27, %p28
    %p30 = scmp.ne.s32.totalorder %s19, %s22
    %p31 = scmp.eq.s32.totalorder %s14, 1
    %p32 = por %p30, %p31
    %p33 = scmp.ne.s32.totalorder %s22, %s23
    %p34 = scmp.eq.s32.totalorder %s14, 0
    %p35 = por %p33, %p34
    %p36 = scmp.ne.s32.totalorder %s22, %s23
    %p37 = scmp.eq.s32.totalorder %s15, 1
    %p38 = por %p36, %p37
    %p40 = scmp.ne.s32.totalorder %s23, %s39
    %p41 = scmp.eq.s32.totalorder %s15, 0
    %p42 = por %p40, %p41
    %s44 = sadd.s32 %s43, 1
    %p47 = scmp.eq.s32.totalorder %s9, 1
    %p48 = scmp.ne.s32.totalorder %s43, %s45
    %p49 = scmp.eq.s32.totalorder %s9, 0
    %p50 = por %p48, %p49
    %p51 = scmp.ne.s32.totalorder %s43, %s45
    %p52 = scmp.eq.s32.totalorder %s14, 1
    %p53 = por %p51, %p52
    %p54 = scmp.ne.s32.totalorder %s45, %s46
    %p55 = scmp.eq.s32.totalorder %s14, 0
    %p56 = por %p54, %p55
    %p57 = scmp.ne.s32.totalorder %s45, %s46
    %p58 = scmp.eq.s32.totalorder %s15, 1
    %p59 = por %p57, %p58
    %p61 = scmp.ne.s32.totalorder %s46, %s60
    %p62 = scmp.eq.s32.totalorder %s15, 0
    %p63 = por %p61, %p62
    %s65 = sadd.s32 %s64, 1
    %p68 = scmp.eq.s32.totalorder %s9, 1
    %p69 = scmp.ne.s32.totalorder %s64, %s66
    %p70 = scmp.eq.s32.totalorder %s9, 0
    %p71 = por %p69, %p70
    %p72 = scmp.ne.s32.totalorder %s64, %s66
    %p73 = scmp.eq.s32.totalorder %s14, 1
    %p74 = por %p72, %p73
    %p75 = scmp.ne.s32.totalorder %s66, %s67
    %p76 = scmp.eq.s32.totalorder %s14, 0
    %p77 = por %p75, %p76
    %p78 = scmp.ne.s32.totalorder %s66, %s67
    %p79 = scmp.eq.s32.totalorder %s15, 1
    %p80 = por %p78, %p79
    %p82 = scmp.ne.s32.totalorder %s67, %s81
    %p83 = scmp.eq.s32.totalorder %s15, 0
    %p84 = por %p82, %p83
    %s85 = ssub.s32 %s9, %s16
    %p86 = scmp.eq.s32.totalorder %s85, 0
    %s88 = sadd.s32 %s87, 1
    %s89 = scalar_select %p86, %s87, %s88
    %p92 = pneg %p86
    %p93 = scmp.eq.s32.totalorder %s9, 1
    %p94 = por %p92, %p93
    %p95 = scmp.ne.s32.totalorder %s87, %s90
    %p96 = scmp.eq.s32.totalorder %s9, 0
    %p97 = por %p95, %p96
    %p98 = scmp.ne.s32.totalorder %s87, %s90
    %p99 = scmp.eq.s32.totalorder %s14, 1
    %p100 = por %p98, %p99
    %p101 = scmp.ne.s32.totalorder %s90, %s91
    %p102 = scmp.eq.s32.totalorder %s14, 0
    %p103 = por %p101, %p102
    %p104 = scmp.ne.s32.totalorder %s90, %s91
    %p105 = scmp.eq.s32.totalorder %s15, 1
    %p106 = por %p104, %p105
    %p108 = scmp.ne.s32.totalorder %s91, %s107
    %p109 = scmp.eq.s32.totalorder %s15, 0
    %p110 = por %p108, %p109
    %p111 = scmp.le.s32.totalorder 1, %s9
    %p112 = scmp.lt.s32.totalorder %s9, 3
    %p113 = pnand %p111, %p112
    %p114 = pneg %p113
    // Predicated region
    $region9: #{conv_layer_forward.1} parent=5 // pred_check
      _
    $region10: #{conv_layer_forward.1} parent=5 // pred_check_branch
      %116 = sbr.rel (%p113) target = $region12
    $region11: #{conv_layer_forward.1} parent=5 // pred_region
      %s117 = ssub.s32 %s9, 1
      // Predicated region
      $region13: #{conv_layer_forward.1} parent=11 // pred_check
        %p118 = pneg %p56
      $region14: #{conv_layer_forward.1} parent=11 // pred_check_branch
        %120 = sbr.rel (%p118) target = $region16
      $region15: #{conv_layer_forward.1} parent=11 // pred_region
        _
      $region16: #{conv_layer_forward.1} parent=11 // pred_fallthru
        _
      // Predicated region
      $region17: #{conv_layer_forward.1} parent=11 // pred_check
        %p121 = pneg %p77
      $region18: #{conv_layer_forward.1} parent=11 // pred_check_branch
        %123 = sbr.rel (%p121) target = $region20
      $region19: #{conv_layer_forward.1} parent=11 // pred_region
        _
      $region20: #{conv_layer_forward.1} parent=11 // pred_fallthru
        _
    $region12: #{conv_layer_forward.1} parent=5 // pred_fallthru
      _
    %p124 = scmp.lt.s32.totalorder %s9, 2
    // Predicated region
    $region21: #{conv_layer_forward.1} parent=5 // pred_check
      %p125 = pneg %p124
    $region22: #{conv_layer_forward.1} parent=5 // pred_check_branch
      %127 = sbr.rel (%p125) target = $region24
    $region23: #{conv_layer_forward.1} parent=5 // pred_region
      // Predicated region
      $region25: #{conv_layer_forward.1} parent=23 // pred_check
        %p128 = pneg %p29
      $region26: #{conv_layer_forward.1} parent=23 // pred_check_branch
        %130 = sbr.rel (%p128) target = $region28
      $region27: #{conv_layer_forward.1} parent=23 // pred_region
        %p131 = scmp.lt.s32.totalorder %s9, 1
        %s132 = scalar_select %p131, %s9, 1
        %s133 = smul.addr %s132, 19
        %s134 = smul.addr %s133, 4
        %s135 = scalar_lea.vmem %s0, %s134
      $region28: #{conv_layer_forward.1} parent=23 // pred_fallthru
        _
    $region24: #{conv_layer_forward.1} parent=5 // pred_fallthru
      _
    %p136 = scmp.le.s32.totalorder 1, %s9
    %p137 = scmp.lt.s32.totalorder %s9, 3
    %p138 = pnand %p136, %p137
    %p139 = pneg %p138
    // Predicated region
    $region29: #{conv_layer_forward.1} parent=5 // pred_check
      _
    $region30: #{conv_layer_forward.1} parent=5 // pred_check_branch
      %141 = sbr.rel (%p138) target = $region32
    $region31: #{conv_layer_forward.1} parent=5 // pred_region
      %s142 = ssub.s32 %s9, 1
      %p143 = scmp.lt.s32.totalorder %s14, 1
      %s144 = scalar_select %p143, %s14, 1
      %s145 = smul.addr %s144, 19
      %s146 = smul.addr %s145, 4
      %s147 = scalar_lea.vmem %s0, %s146
      %p148 = pneg %p35
      %p149 = pneg %p32
      %p150 = pneg %p56
      %p151 = pneg %p53
      %p152 = pneg %p77
      %p153 = pneg %p74
      %p154 = pneg %p103
      %p155 = pneg %p100
      %p156 = scmp.lt.s32.totalorder %s14, 1
      %s157 = scalar_select %p156, %s14, 1
      %s158 = smul.addr %s157, 16
      %s159 = smul.addr %s158, 8
      %s160 = scalar_lea.vmem %s3, %s159
      %p161 = scmp.lt.s32.totalorder %s14, 1
      %s162 = scalar_select %p161, %s14, 1
      %s163 = smul.addr %s162, 19
      %s164 = smul.addr %s163, 4
      %s165 = scalar_lea.vmem %s0, %s164
      %p166 = scmp.lt.s32.totalorder %s14, 1
      %s167 = scalar_select %p166, %s14, 1
      %s168 = smul.addr %s167, 16
      %s169 = smul.addr %s168, 8
      %s170 = scalar_lea.vmem %s3, %s169
      %v172 = vld [vmem:[%s165] sm:$0xff]
      %v173 = vld [vmem:[%s165 + $0x8] sm:$0xff]
      %v174 = vld [vmem:[%s165 + $0x10] sm:$0xff]
      %v175 = vld [vmem:[%s165 + $0x18] sm:$0xff]
      %v176 = vld [vmem:[%s165 + $0x20] sm:$0xff]
      %v177 = vld [vmem:[%s165 + $0x28] sm:$0xff]
      %v178 = vld [vmem:[%s165 + $0x30] sm:$0xff]
      %v179 = vld [vmem:[%s165 + $0x38] sm:$0xff]
      %180 = vst [vmem:[#allocation2] sm:$0xff] %v172
      %181 = vst [vmem:[#allocation2 + $0x8] sm:$0xff] %v173
      %182 = vst [vmem:[#allocation2 + $0x10] sm:$0xff] %v174
      %183 = vst [vmem:[#allocation2 + $0x18] sm:$0xff] %v175
      %184 = vst [vmem:[#allocation2 + $0x20] sm:$0xff] %v176
      %185 = vst [vmem:[#allocation2 + $0x28] sm:$0xff] %v177
      %186 = vst [vmem:[#allocation2 + $0x30] sm:$0xff] %v178
      %187 = vst [vmem:[#allocation2 + $0x38] sm:$0xff] %v179
      %v188 = vld [vmem:[%s165] sm:$0xff]
      %v189 = vld [vmem:[%s165 + $0x8] sm:$0xff]
      %v190 = vld [vmem:[%s165 + $0x10] sm:$0xff]
      %v191 = vld [vmem:[%s165 + $0x18] sm:$0xff]
      %v192 = vld [vmem:[%s165 + $0x20] sm:$0xff]
      %v193 = vld [vmem:[%s165 + $0x28] sm:$0xff]
      %v194 = vld [vmem:[%s165 + $0x30] sm:$0xff]
      %v195 = vld [vmem:[%s165 + $0x38] sm:$0xff]
      %v196 = vld [vmem:[%s165 + $0x40] sm:$0xf]
      %206 = vrot.lane.b32.xlu0 %v188, 127
      %v207 = vpop.permute.xlu0 %206
      %208 = vrot.lane.b32.xlu0 %v189, 127
      %v209 = vpop.permute.xlu0 %208
      %210 = vrot.lane.b32.xlu0 %v190, 127
      %v211 = vpop.permute.xlu0 %210
      %212 = vrot.lane.b32.xlu0 %v191, 127
      %v213 = vpop.permute.xlu0 %212
      %214 = vrot.lane.b32.xlu0 %v192, 127
      %v215 = vpop.permute.xlu0 %214
      %216 = vrot.lane.b32.xlu0 %v193, 127
      %v217 = vpop.permute.xlu0 %216
      %218 = vrot.lane.b32.xlu0 %v194, 127
      %v219 = vpop.permute.xlu0 %218
      %220 = vrot.lane.b32.xlu0 %v195, 127
      %v221 = vpop.permute.xlu0 %220
      %222 = vrot.lane.b32.xlu0 %v196, 127
      %v223 = vpop.permute.xlu0 %222
      %v224 = vrot.slane %v207, 4
      %v225 = vrot.slane %v209, 4
      %v226 = vrot.slane %v211, 4
      %v227 = vrot.slane %v213, 4
      %v228 = vrot.slane %v215, 4
      %v229 = vrot.slane %v217, 4
      %v230 = vrot.slane %v219, 4
      %v231 = vrot.slane %v221, 4
      %v232 = vrot.slane %v223, 4
      %vm233 = vcmask 1043456
      %v234 = vsel %vm233, %v224, %v225
      %vm235 = vcmask 1039360
      %v236 = vsel %vm235, %v207, %v234
      %v237 = vsel %vm233, %v225, %v226
      %v238 = vsel %vm235, %v209, %v237
      %v239 = vsel %vm233, %v226, %v227
      %v240 = vsel %vm235, %v211, %v239
      %v241 = vsel %vm233, %v227, %v228
      %v242 = vsel %vm235, %v213, %v241
      %v243 = vsel %vm233, %v228, %v229
      %v244 = vsel %vm235, %v215, %v243
      %v245 = vsel %vm233, %v229, %v230
      %v246 = vsel %vm235, %v217, %v245
      %v247 = vsel %vm233, %v230, %v231
      %v248 = vsel %vm235, %v219, %v247
      %v249 = vsel %vm233, %v231, %v232
      %v250 = vsel %vm235, %v221, %v249
      %259 = vst [vmem:[#allocation2 + $0x40] sm:$0xff] %v236
      %260 = vst [vmem:[#allocation2 + $0x48] sm:$0xff] %v238
      %261 = vst [vmem:[#allocation2 + $0x50] sm:$0xff] %v240
      %262 = vst [vmem:[#allocation2 + $0x58] sm:$0xff] %v242
      %263 = vst [vmem:[#allocation2 + $0x60] sm:$0xff] %v244
      %264 = vst [vmem:[#allocation2 + $0x68] sm:$0xff] %v246
      %265 = vst [vmem:[#allocation2 + $0x70] sm:$0xff] %v248
      %266 = vst [vmem:[#allocation2 + $0x78] sm:$0xff] %v250
      %v267 = vld [vmem:[%s165] sm:$0xff]
      %v268 = vld [vmem:[%s165 + $0x8] sm:$0xff]
      %v269 = vld [vmem:[%s165 + $0x10] sm:$0xff]
      %v270 = vld [vmem:[%s165 + $0x18] sm:$0xff]
      %v271 = vld [vmem:[%s165 + $0x20] sm:$0xff]
      %v272 = vld [vmem:[%s165 + $0x28] sm:$0xff]
      %v273 = vld [vmem:[%s165 + $0x30] sm:$0xff]
      %v274 = vld [vmem:[%s165 + $0x38] sm:$0xff]
      %v275 = vld [vmem:[%s165 + $0x40] sm:$0xf]
      %285 = vrot.lane.b32.xlu0 %v267, 126
      %v286 = vpop.permute.xlu0 %285
      %287 = vrot.lane.b32.xlu0 %v268, 126
      %v288 = vpop.permute.xlu0 %287
      %289 = vrot.lane.b32.xlu0 %v269, 126
      %v290 = vpop.permute.xlu0 %289
      %291 = vrot.lane.b32.xlu0 %v270, 126
      %v292 = vpop.permute.xlu0 %291
      %293 = vrot.lane.b32.xlu0 %v271, 126
      %v294 = vpop.permute.xlu0 %293
      %295 = vrot.lane.b32.xlu0 %v272, 126
      %v296 = vpop.permute.xlu0 %295
      %297 = vrot.lane.b32.xlu0 %v273, 126
      %v298 = vpop.permute.xlu0 %297
      %299 = vrot.lane.b32.xlu0 %v274, 126
      %v300 = vpop.permute.xlu0 %299
      %301 = vrot.lane.b32.xlu0 %v275, 126
      %v302 = vpop.permute.xlu0 %301
      %v303 = vrot.slane %v286, 4
      %v304 = vrot.slane %v288, 4
      %v305 = vrot.slane %v290, 4
      %v306 = vrot.slane %v292, 4
      %v307 = vrot.slane %v294, 4
      %v308 = vrot.slane %v296, 4
      %v309 = vrot.slane %v298, 4
      %v310 = vrot.slane %v300, 4
      %v311 = vrot.slane %v302, 4
      %v312 = vsel %vm233, %v303, %v304
      %vm313 = vcmask 1031168
      %v314 = vsel %vm313, %v286, %v312
      %v315 = vsel %vm233, %v304, %v305
      %v316 = vsel %vm313, %v288, %v315
      %v317 = vsel %vm233, %v305, %v306
      %v318 = vsel %vm313, %v290, %v317
      %v319 = vsel %vm233, %v306, %v307
      %v320 = vsel %vm313, %v292, %v319
      %v321 = vsel %vm233, %v307, %v308
      %v322 = vsel %vm313, %v294, %v321
      %v323 = vsel %vm233, %v308, %v309
      %v324 = vsel %vm313, %v296, %v323
      %v325 = vsel %vm233, %v309, %v310
      %v326 = vsel %vm313, %v298, %v325
      %v327 = vsel %vm233, %v310, %v311
      %v328 = vsel %vm313, %v300, %v327
      %337 = vst [vmem:[#allocation2 + $0x80] sm:$0xff] %v314
      %338 = vst [vmem:[#allocation2 + $0x88] sm:$0xff] %v316
      %339 = vst [vmem:[#allocation2 + $0x90] sm:$0xff] %v318
      %340 = vst [vmem:[#allocation2 + $0x98] sm:$0xff] %v320
      %341 = vst [vmem:[#allocation2 + $0xa0] sm:$0xff] %v322
      %342 = vst [vmem:[#allocation2 + $0xa8] sm:$0xff] %v324
      %343 = vst [vmem:[#allocation2 + $0xb0] sm:$0xff] %v326
      %344 = vst [vmem:[#allocation2 + $0xb8] sm:$0xff] %v328
      %v345 = vld [vmem:[%s165 + $0x4] sm:$0xff]
      %v346 = vld [vmem:[%s165 + $0xc] sm:$0xff]
      %v347 = vld [vmem:[%s165 + $0x14] sm:$0xff]
      %v348 = vld [vmem:[%s165 + $0x1c] sm:$0xff]
      %v349 = vld [vmem:[%s165 + $0x24] sm:$0xff]
      %v350 = vld [vmem:[%s165 + $0x2c] sm:$0xff]
      %v351 = vld [vmem:[%s165 + $0x34] sm:$0xff]
      %v352 = vld [vmem:[%s165 + $0x3c] sm:$0xff]
      %353 = vst [vmem:[#allocation2 + $0xc0] sm:$0xff] %v345
      %354 = vst [vmem:[#allocation2 + $0xc8] sm:$0xff] %v346
      %355 = vst [vmem:[#allocation2 + $0xd0] sm:$0xff] %v347
      %356 = vst [vmem:[#allocation2 + $0xd8] sm:$0xff] %v348
      %357 = vst [vmem:[#allocation2 + $0xe0] sm:$0xff] %v349
      %358 = vst [vmem:[#allocation2 + $0xe8] sm:$0xff] %v350
      %359 = vst [vmem:[#allocation2 + $0xf0] sm:$0xff] %v351
      %360 = vst [vmem:[#allocation2 + $0xf8] sm:$0xff] %v352
      %v361 = vld [vmem:[%s165 + $0x4] sm:$0xff]
      %v362 = vld [vmem:[%s165 + $0xc] sm:$0xff]
      %v363 = vld [vmem:[%s165 + $0x14] sm:$0xff]
      %v364 = vld [vmem:[%s165 + $0x1c] sm:$0xff]
      %v365 = vld [vmem:[%s165 + $0x24] sm:$0xff]
      %v366 = vld [vmem:[%s165 + $0x2c] sm:$0xff]
      %v367 = vld [vmem:[%s165 + $0x34] sm:$0xff]
      %v368 = vld [vmem:[%s165 + $0x3c] sm:$0xff]
      %v369 = vld [vmem:[%s165 + $0x44] sm:$0xf]
      %379 = vrot.lane.b32.xlu0 %v361, 127
      %v380 = vpop.permute.xlu0 %379
      %381 = vrot.lane.b32.xlu0 %v362, 127
      %v382 = vpop.permute.xlu0 %381
      %383 = vrot.lane.b32.xlu0 %v363, 127
      %v384 = vpop.permute.xlu0 %383
      %385 = vrot.lane.b32.xlu0 %v364, 127
      %v386 = vpop.permute.xlu0 %385
      %387 = vrot.lane.b32.xlu0 %v365, 127
      %v388 = vpop.permute.xlu0 %387
      %389 = vrot.lane.b32.xlu0 %v366, 127
      %v390 = vpop.permute.xlu0 %389
      %391 = vrot.lane.b32.xlu0 %v367, 127
      %v392 = vpop.permute.xlu0 %391
      %393 = vrot.lane.b32.xlu0 %v368, 127
      %v394 = vpop.permute.xlu0 %393
      %395 = vrot.lane.b32.xlu0 %v369, 127
      %v396 = vpop.permute.xlu0 %395
      %v397 = vrot.slane %v380, 4
      %v398 = vrot.slane %v382, 4
      %v399 = vrot.slane %v384, 4
      %v400 = vrot.slane %v386, 4
      %v401 = vrot.slane %v388, 4
      %v402 = vrot.slane %v390, 4
      %v403 = vrot.slane %v392, 4
      %v404 = vrot.slane %v394, 4
      %v405 = vrot.slane %v396, 4
      %v406 = vsel %vm233, %v397, %v398
      %v407 = vsel %vm235, %v380, %v406
      %v408 = vsel %vm233, %v398, %v399
      %v409 = vsel %vm235, %v382, %v408
      %v410 = vsel %vm233, %v399, %v400
      %v411 = vsel %vm235, %v384, %v410
      %v412 = vsel %vm233, %v400, %v401
      %v413 = vsel %vm235, %v386, %v412
      %v414 = vsel %vm233, %v401, %v402
      %v415 = vsel %vm235, %v388, %v414
      %v416 = vsel %vm233, %v402, %v403
      %v417 = vsel %vm235, %v390, %v416
      %v418 = vsel %vm233, %v403, %v404
      %v419 = vsel %vm235, %v392, %v418
      %v420 = vsel %vm233, %v404, %v405
      %v421 = vsel %vm235, %v394, %v420
      %430 = vst [vmem:[#allocation2 + $0x100] sm:$0xff] %v407
      %431 = vst [vmem:[#allocation2 + $0x108] sm:$0xff] %v409
      %432 = vst [vmem:[#allocation2 + $0x110] sm:$0xff] %v411
      %433 = vst [vmem:[#allocation2 + $0x118] sm:$0xff] %v413
      %434 = vst [vmem:[#allocation2 + $0x120] sm:$0xff] %v415
      %435 = vst [vmem:[#allocation2 + $0x128] sm:$0xff] %v417
      %436 = vst [vmem:[#allocation2 + $0x130] sm:$0xff] %v419
      %437 = vst [vmem:[#allocation2 + $0x138] sm:$0xff] %v421
      %v438 = vld [vmem:[%s165 + $0x4] sm:$0xff]
      %v439 = vld [vmem:[%s165 + $0xc] sm:$0xff]
      %v440 = vld [vmem:[%s165 + $0x14] sm:$0xff]
      %v441 = vld [vmem:[%s165 + $0x1c] sm:$0xff]
      %v442 = vld [vmem:[%s165 + $0x24] sm:$0xff]
      %v443 = vld [vmem:[%s165 + $0x2c] sm:$0xff]
      %v444 = vld [vmem:[%s165 + $0x34] sm:$0xff]
      %v445 = vld [vmem:[%s165 + $0x3c] sm:$0xff]
      %v446 = vld [vmem:[%s165 + $0x44] sm:$0xf]
      %456 = vrot.lane.b32.xlu0 %v438, 126
      %v457 = vpop.permute.xlu0 %456
      %458 = vrot.lane.b32.xlu0 %v439, 126
      %v459 = vpop.permute.xlu0 %458
      %460 = vrot.lane.b32.xlu0 %v440, 126
      %v461 = vpop.permute.xlu0 %460
      %462 = vrot.lane.b32.xlu0 %v441, 126
      %v463 = vpop.permute.xlu0 %462
      %464 = vrot.lane.b32.xlu0 %v442, 126
      %v465 = vpop.permute.xlu0 %464
      %466 = vrot.lane.b32.xlu0 %v443, 126
      %v467 = vpop.permute.xlu0 %466
      %468 = vrot.lane.b32.xlu0 %v444, 126
      %v469 = vpop.permute.xlu0 %468
      %470 = vrot.lane.b32.xlu0 %v445, 126
      %v471 = vpop.permute.xlu0 %470
      %472 = vrot.lane.b32.xlu0 %v446, 126
      %v473 = vpop.permute.xlu0 %472
      %v474 = vrot.slane %v457, 4
      %v475 = vrot.slane %v459, 4
      %v476 = vrot.slane %v461, 4
      %v477 = vrot.slane %v463, 4
      %v478 = vrot.slane %v465, 4
      %v479 = vrot.slane %v467, 4
      %v480 = vrot.slane %v469, 4
      %v481 = vrot.slane %v471, 4
      %v482 = vrot.slane %v473, 4
      %v483 = vsel %vm233, %v474, %v475
      %v484 = vsel %vm313, %v457, %v483
      %v485 = vsel %vm233, %v475, %v476
      %v486 = vsel %vm313, %v459, %v485
      %v487 = vsel %vm233, %v476, %v477
      %v488 = vsel %vm313, %v461, %v487
      %v489 = vsel %vm233, %v477, %v478
      %v490 = vsel %vm313, %v463, %v489
      %v491 = vsel %vm233, %v478, %v479
      %v492 = vsel %vm313, %v465, %v491
      %v493 = vsel %vm233, %v479, %v480
      %v494 = vsel %vm313, %v467, %v493
      %v495 = vsel %vm233, %v480, %v481
      %v496 = vsel %vm313, %v469, %v495
      %v497 = vsel %vm233, %v481, %v482
      %v498 = vsel %vm313, %v471, %v497
      %507 = vst [vmem:[#allocation2 + $0x140] sm:$0xff] %v484
      %508 = vst [vmem:[#allocation2 + $0x148] sm:$0xff] %v486
      %509 = vst [vmem:[#allocation2 + $0x150] sm:$0xff] %v488
      %510 = vst [vmem:[#allocation2 + $0x158] sm:$0xff] %v490
      %511 = vst [vmem:[#allocation2 + $0x160] sm:$0xff] %v492
      %512 = vst [vmem:[#allocation2 + $0x168] sm:$0xff] %v494
      %513 = vst [vmem:[#allocation2 + $0x170] sm:$0xff] %v496
      %514 = vst [vmem:[#allocation2 + $0x178] sm:$0xff] %v498
      %v515 = vld [vmem:[%s165 + $0x8] sm:$0xff]
      %v516 = vld [vmem:[%s165 + $0x10] sm:$0xff]
      %v517 = vld [vmem:[%s165 + $0x18] sm:$0xff]
      %v518 = vld [vmem:[%s165 + $0x20] sm:$0xff]
      %v519 = vld [vmem:[%s165 + $0x28] sm:$0xff]
      %v520 = vld [vmem:[%s165 + $0x30] sm:$0xff]
      %v521 = vld [vmem:[%s165 + $0x38] sm:$0xff]
      %v522 = vld [vmem:[%s165 + $0x40] sm:$0xff]
      %523 = vst [vmem:[#allocation2 + $0x180] sm:$0xff] %v515
      %524 = vst [vmem:[#allocation2 + $0x188] sm:$0xff] %v516
      %525 = vst [vmem:[#allocation2 + $0x190] sm:$0xff] %v517
      %526 = vst [vmem:[#allocation2 + $0x198] sm:$0xff] %v518
      %527 = vst [vmem:[#allocation2 + $0x1a0] sm:$0xff] %v519
      %528 = vst [vmem:[#allocation2 + $0x1a8] sm:$0xff] %v520
      %529 = vst [vmem:[#allocation2 + $0x1b0] sm:$0xff] %v521
      %530 = vst [vmem:[#allocation2 + $0x1b8] sm:$0xff] %v522
      %v531 = vld [vmem:[%s165 + $0x8] sm:$0xff]
      %v532 = vld [vmem:[%s165 + $0x10] sm:$0xff]
      %v533 = vld [vmem:[%s165 + $0x18] sm:$0xff]
      %v534 = vld [vmem:[%s165 + $0x20] sm:$0xff]
      %v535 = vld [vmem:[%s165 + $0x28] sm:$0xff]
      %v536 = vld [vmem:[%s165 + $0x30] sm:$0xff]
      %v537 = vld [vmem:[%s165 + $0x38] sm:$0xff]
      %v538 = vld [vmem:[%s165 + $0x40] sm:$0xff]
      %v539 = vld [vmem:[%s165 + $0x48] sm:$0xf]
      %549 = vrot.lane.b32.xlu0 %v531, 127
      %v550 = vpop.permute.xlu0 %549
      %551 = vrot.lane.b32.xlu0 %v532, 127
      %v552 = vpop.permute.xlu0 %551
      %553 = vrot.lane.b32.xlu0 %v533, 127
      %v554 = vpop.permute.xlu0 %553
      %555 = vrot.lane.b32.xlu0 %v534, 127
      %v556 = vpop.permute.xlu0 %555
      %557 = vrot.lane.b32.xlu0 %v535, 127
      %v558 = vpop.permute.xlu0 %557
      %559 = vrot.lane.b32.xlu0 %v536, 127
      %v560 = vpop.permute.xlu0 %559
      %561 = vrot.lane.b32.xlu0 %v537, 127
      %v562 = vpop.permute.xlu0 %561
      %563 = vrot.lane.b32.xlu0 %v538, 127
      %v564 = vpop.permute.xlu0 %563
      %565 = vrot.lane.b32.xlu0 %v539, 127
      %v566 = vpop.permute.xlu0 %565
      %v567 = vrot.slane %v550, 4
      %v568 = vrot.slane %v552, 4
      %v569 = vrot.slane %v554, 4
      %v570 = vrot.slane %v556, 4
      %v571 = vrot.slane %v558, 4
      %v572 = vrot.slane %v560, 4
      %v573 = vrot.slane %v562, 4
      %v574 = vrot.slane %v564, 4
      %v575 = vrot.slane %v566, 4
      %v576 = vsel %vm233, %v567, %v568
      %v577 = vsel %vm235, %v550, %v576
      %v578 = vsel %vm233, %v568, %v569
      %v579 = vsel %vm235, %v552, %v578
      %v580 = vsel %vm233, %v569, %v570
      %v581 = vsel %vm235, %v554, %v580
      %v582 = vsel %vm233, %v570, %v571
      %v583 = vsel %vm235, %v556, %v582
      %v584 = vsel %vm233, %v571, %v572
      %v585 = vsel %vm235, %v558, %v584
      %v586 = vsel %vm233, %v572, %v573
      %v587 = vsel %vm235, %v560, %v586
      %v588 = vsel %vm233, %v573, %v574
      %v589 = vsel %vm235, %v562, %v588
      %v590 = vsel %vm233, %v574, %v575
      %v591 = vsel %vm235, %v564, %v590
      %600 = vst [vmem:[#allocation2 + $0x1c0] sm:$0xff] %v577
      %601 = vst [vmem:[#allocation2 + $0x1c8] sm:$0xff] %v579
      %602 = vst [vmem:[#allocation2 + $0x1d0] sm:$0xff] %v581
      %603 = vst [vmem:[#allocation2 + $0x1d8] sm:$0xff] %v583
      %604 = vst [vmem:[#allocation2 + $0x1e0] sm:$0xff] %v585
      %605 = vst [vmem:[#allocation2 + $0x1e8] sm:$0xff] %v587
      %606 = vst [vmem:[#allocation2 + $0x1f0] sm:$0xff] %v589
      %607 = vst [vmem:[#allocation2 + $0x1f8] sm:$0xff] %v591
      %v608 = vld [vmem:[%s165 + $0x8] sm:$0xff]
      %v609 = vld [vmem:[%s165 + $0x10] sm:$0xff]
      %v610 = vld [vmem:[%s165 + $0x18] sm:$0xff]
      %v611 = vld [vmem:[%s165 + $0x20] sm:$0xff]
      %v612 = vld [vmem:[%s165 + $0x28] sm:$0xff]
      %v613 = vld [vmem:[%s165 + $0x30] sm:$0xff]
      %v614 = vld [vmem:[%s165 + $0x38] sm:$0xff]
      %v615 = vld [vmem:[%s165 + $0x40] sm:$0xff]
      %v616 = vld [vmem:[%s165 + $0x48] sm:$0xf]
      %626 = vrot.lane.b32.xlu0 %v608, 126
      %v627 = vpop.permute.xlu0 %626
      %628 = vrot.lane.b32.xlu0 %v609, 126
      %v629 = vpop.permute.xlu0 %628
      %630 = vrot.lane.b32.xlu0 %v610, 126
      %v631 = vpop.permute.xlu0 %630
      %632 = vrot.lane.b32.xlu0 %v611, 126
      %v633 = vpop.permute.xlu0 %632
      %634 = vrot.lane.b32.xlu0 %v612, 126
      %v635 = vpop.permute.xlu0 %634
      %636 = vrot.lane.b32.xlu0 %v613, 126
      %v637 = vpop.permute.xlu0 %636
      %638 = vrot.lane.b32.xlu0 %v614, 126
      %v639 = vpop.permute.xlu0 %638
      %640 = vrot.lane.b32.xlu0 %v615, 126
      %v641 = vpop.permute.xlu0 %640
      %642 = vrot.lane.b32.xlu0 %v616, 126
      %v643 = vpop.permute.xlu0 %642
      %v644 = vrot.slane %v627, 4
      %v645 = vrot.slane %v629, 4
      %v646 = vrot.slane %v631, 4
      %v647 = vrot.slane %v633, 4
      %v648 = vrot.slane %v635, 4
      %v649 = vrot.slane %v637, 4
      %v650 = vrot.slane %v639, 4
      %v651 = vrot.slane %v641, 4
      %v652 = vrot.slane %v643, 4
      %v653 = vsel %vm233, %v644, %v645
      %v654 = vsel %vm313, %v627, %v653
      %v655 = vsel %vm233, %v645, %v646
      %v656 = vsel %vm313, %v629, %v655
      %v657 = vsel %vm233, %v646, %v647
      %v658 = vsel %vm313, %v631, %v657
      %v659 = vsel %vm233, %v647, %v648
      %v660 = vsel %vm313, %v633, %v659
      %v661 = vsel %vm233, %v648, %v649
      %v662 = vsel %vm313, %v635, %v661
      %v663 = vsel %vm233, %v649, %v650
      %v664 = vsel %vm313, %v637, %v663
      %v665 = vsel %vm233, %v650, %v651
      %v666 = vsel %vm313, %v639, %v665
      %v667 = vsel %vm233, %v651, %v652
      %v668 = vsel %vm313, %v641, %v667
      %677 = vst [vmem:[#allocation2 + $0x200] sm:$0xff] %v654
      %678 = vst [vmem:[#allocation2 + $0x208] sm:$0xff] %v656
      %679 = vst [vmem:[#allocation2 + $0x210] sm:$0xff] %v658
      %680 = vst [vmem:[#allocation2 + $0x218] sm:$0xff] %v660
      %681 = vst [vmem:[#allocation2 + $0x220] sm:$0xff] %v662
      %682 = vst [vmem:[#allocation2 + $0x228] sm:$0xff] %v664
      %683 = vst [vmem:[#allocation2 + $0x230] sm:$0xff] %v666
      %684 = vst [vmem:[#allocation2 + $0x238] sm:$0xff] %v668
      %v685 = vld [vmem:[%s1] sm:$0xf]
      %v686 = vld [vmem:[#allocation2] sm:$0xff]
      %v687 = vld [vmem:[#allocation2 + $0x8] sm:$0xff]
      %v688 = vld [vmem:[#allocation2 + $0x10] sm:$0xff]
      %v689 = vld [vmem:[#allocation2 + $0x18] sm:$0xff]
      %v690 = vld [vmem:[#allocation2 + $0x20] sm:$0xff]
      %v691 = vld [vmem:[#allocation2 + $0x28] sm:$0xff]
      %v692 = vld [vmem:[#allocation2 + $0x30] sm:$0xff]
      %v693 = vld [vmem:[#allocation2 + $0x38] sm:$0xff]
      %v694 = vld [vmem:[#allocation2 + $0x40] sm:$0xff]
      %v695 = vld [vmem:[#allocation2 + $0x48] sm:$0xff]
      %v696 = vld [vmem:[#allocation2 + $0x50] sm:$0xff]
      %v697 = vld [vmem:[#allocation2 + $0x58] sm:$0xff]
      %v698 = vld [vmem:[#allocation2 + $0x60] sm:$0xff]
      %v699 = vld [vmem:[#allocation2 + $0x68] sm:$0xff]
      %v700 = vld [vmem:[#allocation2 + $0x70] sm:$0xff]
      %v701 = vld [vmem:[#allocation2 + $0x78] sm:$0xff]
      %v702 = vld [vmem:[#allocation2 + $0x80] sm:$0xff]
      %v703 = vld [vmem:[#allocation2 + $0x88] sm:$0xff]
      %v704 = vld [vmem:[#allocation2 + $0x90] sm:$0xff]
      %v705 = vld [vmem:[#allocation2 + $0x98] sm:$0xff]
      %v706 = vld [vmem:[#allocation2 + $0xa0] sm:$0xff]
      %v707 = vld [vmem:[#allocation2 + $0xa8] sm:$0xff]
      %v708 = vld [vmem:[#allocation2 + $0xb0] sm:$0xff]
      %v709 = vld [vmem:[#allocation2 + $0xb8] sm:$0xff]
      %v710 = vld [vmem:[#allocation2 + $0xc0] sm:$0xff]
      %v711 = vld [vmem:[#allocation2 + $0xc8] sm:$0xff]
      %v712 = vld [vmem:[#allocation2 + $0xd0] sm:$0xff]
      %v713 = vld [vmem:[#allocation2 + $0xd8] sm:$0xff]
      %v714 = vld [vmem:[#allocation2 + $0xe0] sm:$0xff]
      %v715 = vld [vmem:[#allocation2 + $0xe8] sm:$0xff]
      %v716 = vld [vmem:[#allocation2 + $0xf0] sm:$0xff]
      %v717 = vld [vmem:[#allocation2 + $0xf8] sm:$0xff]
      %v718 = vld [vmem:[#allocation2 + $0x100] sm:$0xff]
      %v719 = vld [vmem:[#allocation2 + $0x108] sm:$0xff]
      %v720 = vld [vmem:[#allocation2 + $0x110] sm:$0xff]
      %v721 = vld [vmem:[#allocation2 + $0x118] sm:$0xff]
      %v722 = vld [vmem:[#allocation2 + $0x120] sm:$0xff]
      %v723 = vld [vmem:[#allocation2 + $0x128] sm:$0xff]
      %v724 = vld [vmem:[#allocation2 + $0x130] sm:$0xff]
      %v725 = vld [vmem:[#allocation2 + $0x138] sm:$0xff]
      %v726 = vld [vmem:[#allocation2 + $0x140] sm:$0xff]
      %v727 = vld [vmem:[#allocation2 + $0x148] sm:$0xff]
      %v728 = vld [vmem:[#allocation2 + $0x150] sm:$0xff]
      %v729 = vld [vmem:[#allocation2 + $0x158] sm:$0xff]
      %v730 = vld [vmem:[#allocation2 + $0x160] sm:$0xff]
      %v731 = vld [vmem:[#allocation2 + $0x168] sm:$0xff]
      %v732 = vld [vmem:[#allocation2 + $0x170] sm:$0xff]
      %v733 = vld [vmem:[#allocation2 + $0x178] sm:$0xff]
      %v734 = vld [vmem:[#allocation2 + $0x180] sm:$0xff]
      %v735 = vld [vmem:[#allocation2 + $0x188] sm:$0xff]
      %v736 = vld [vmem:[#allocation2 + $0x190] sm:$0xff]
      %v737 = vld [vmem:[#allocation2 + $0x198] sm:$0xff]
      %v738 = vld [vmem:[#allocation2 + $0x1a0] sm:$0xff]
      %v739 = vld [vmem:[#allocation2 + $0x1a8] sm:$0xff]
      %v740 = vld [vmem:[#allocation2 + $0x1b0] sm:$0xff]
      %v741 = vld [vmem:[#allocation2 + $0x1b8] sm:$0xff]
      %v742 = vld [vmem:[#allocation2 + $0x1c0] sm:$0xff]
      %v743 = vld [vmem:[#allocation2 + $0x1c8] sm:$0xff]
      %v744 = vld [vmem:[#allocation2 + $0x1d0] sm:$0xff]
      %v745 = vld [vmem:[#allocation2 + $0x1d8] sm:$0xff]
      %v746 = vld [vmem:[#allocation2 + $0x1e0] sm:$0xff]
      %v747 = vld [vmem:[#allocation2 + $0x1e8] sm:$0xff]
      %v748 = vld [vmem:[#allocation2 + $0x1f0] sm:$0xff]
      %v749 = vld [vmem:[#allocation2 + $0x1f8] sm:$0xff]
      %v750 = vld [vmem:[#allocation2 + $0x200] sm:$0xff]
      %v751 = vld [vmem:[#allocation2 + $0x208] sm:$0xff]
      %v752 = vld [vmem:[#allocation2 + $0x210] sm:$0xff]
      %v753 = vld [vmem:[#allocation2 + $0x218] sm:$0xff]
      %v754 = vld [vmem:[#allocation2 + $0x220] sm:$0xff]
      %v755 = vld [vmem:[#allocation2 + $0x228] sm:$0xff]
      %v756 = vld [vmem:[#allocation2 + $0x230] sm:$0xff]
      %v757 = vld [vmem:[#allocation2 + $0x238] sm:$0xff]
      %v758 = vld [vmem:[%s2] sm:$0xff]
      %760 = vset.pattern.permute.xlu0 0
      %761 = vperm.xlu0 %760, %v758
      %v762 = vpop.permute.xlu0 %761
      %v836 = vunpack.c.l.b16 %v686
      %v837 = vunpack.c.h.b16 %v686
      %v838 = vunpack.c.l.b16 %v687
      %v839 = vunpack.c.h.b16 %v687
      %v840 = vunpack.c.l.b16 %v688
      %v841 = vunpack.c.h.b16 %v688
      %v842 = vunpack.c.l.b16 %v689
      %v843 = vunpack.c.h.b16 %v689
      %v844 = vunpack.c.l.b16 %v690
      %v845 = vunpack.c.h.b16 %v690
      %v846 = vunpack.c.l.b16 %v691
      %v847 = vunpack.c.h.b16 %v691
      %v848 = vunpack.c.l.b16 %v692
      %v849 = vunpack.c.h.b16 %v692
      %v850 = vunpack.c.l.b16 %v693
      %v851 = vunpack.c.h.b16 %v693
      %v852 = vunpack.c.l.b16 %v694
      %v853 = vunpack.c.h.b16 %v694
      %v854 = vunpack.c.l.b16 %v695
      %v855 = vunpack.c.h.b16 %v695
      %v856 = vunpack.c.l.b16 %v696
      %v857 = vunpack.c.h.b16 %v696
      %v858 = vunpack.c.l.b16 %v697
      %v859 = vunpack.c.h.b16 %v697
      %v860 = vunpack.c.l.b16 %v698
      %v861 = vunpack.c.h.b16 %v698
      %v862 = vunpack.c.l.b16 %v699
      %v863 = vunpack.c.h.b16 %v699
      %v864 = vunpack.c.l.b16 %v700
      %v865 = vunpack.c.h.b16 %v700
      %v866 = vunpack.c.l.b16 %v701
      %v867 = vunpack.c.h.b16 %v701
      %v868 = vunpack.c.l.b16 %v702
      %v869 = vunpack.c.h.b16 %v702
      %v870 = vunpack.c.l.b16 %v703
      %v871 = vunpack.c.h.b16 %v703
      %v872 = vunpack.c.l.b16 %v704
      %v873 = vunpack.c.h.b16 %v704
      %v874 = vunpack.c.l.b16 %v705
      %v875 = vunpack.c.h.b16 %v705
      %v876 = vunpack.c.l.b16 %v706
      %v877 = vunpack.c.h.b16 %v706
      %v878 = vunpack.c.l.b16 %v707
      %v879 = vunpack.c.h.b16 %v707
      %v880 = vunpack.c.l.b16 %v708
      %v881 = vunpack.c.h.b16 %v708
      %v882 = vunpack.c.l.b16 %v709
      %v883 = vunpack.c.h.b16 %v709
      %v884 = vunpack.c.l.b16 %v710
      %v885 = vunpack.c.h.b16 %v710
      %v886 = vunpack.c.l.b16 %v711
      %v887 = vunpack.c.h.b16 %v711
      %v888 = vunpack.c.l.b16 %v712
      %v889 = vunpack.c.h.b16 %v712
      %v890 = vunpack.c.l.b16 %v713
      %v891 = vunpack.c.h.b16 %v713
      %v892 = vunpack.c.l.b16 %v714
      %v893 = vunpack.c.h.b16 %v714
      %v894 = vunpack.c.l.b16 %v715
      %v895 = vunpack.c.h.b16 %v715
      %v896 = vunpack.c.l.b16 %v716
      %v897 = vunpack.c.h.b16 %v716
      %v898 = vunpack.c.l.b16 %v717
      %v899 = vunpack.c.h.b16 %v717
      %v900 = vunpack.c.l.b16 %v718
      %v901 = vunpack.c.h.b16 %v718
      %v902 = vunpack.c.l.b16 %v719
      %v903 = vunpack.c.h.b16 %v719
      %v904 = vunpack.c.l.b16 %v720
      %v905 = vunpack.c.h.b16 %v720
      %v906 = vunpack.c.l.b16 %v721
      %v907 = vunpack.c.h.b16 %v721
      %v908 = vunpack.c.l.b16 %v722
      %v909 = vunpack.c.h.b16 %v722
      %v910 = vunpack.c.l.b16 %v723
      %v911 = vunpack.c.h.b16 %v723
      %v912 = vunpack.c.l.b16 %v724
      %v913 = vunpack.c.h.b16 %v724
      %v914 = vunpack.c.l.b16 %v725
      %v915 = vunpack.c.h.b16 %v725
      %v916 = vunpack.c.l.b16 %v726
      %v917 = vunpack.c.h.b16 %v726
      %v918 = vunpack.c.l.b16 %v727
      %v919 = vunpack.c.h.b16 %v727
      %v920 = vunpack.c.l.b16 %v728
      %v921 = vunpack.c.h.b16 %v728
      %v922 = vunpack.c.l.b16 %v729
      %v923 = vunpack.c.h.b16 %v729
      %v924 = vunpack.c.l.b16 %v730
      %v925 = vunpack.c.h.b16 %v730
      %v926 = vunpack.c.l.b16 %v731
      %v927 = vunpack.c.h.b16 %v731
      %v928 = vunpack.c.l.b16 %v732
      %v929 = vunpack.c.h.b16 %v732
      %v930 = vunpack.c.l.b16 %v733
      %v931 = vunpack.c.h.b16 %v733
      %v932 = vunpack.c.l.b16 %v734
      %v933 = vunpack.c.h.b16 %v734
      %v934 = vunpack.c.l.b16 %v735
      %v935 = vunpack.c.h.b16 %v735
      %v936 = vunpack.c.l.b16 %v736
      %v937 = vunpack.c.h.b16 %v736
      %v938 = vunpack.c.l.b16 %v737
      %v939 = vunpack.c.h.b16 %v737
      %v940 = vunpack.c.l.b16 %v738
      %v941 = vunpack.c.h.b16 %v738
      %v942 = vunpack.c.l.b16 %v739
      %v943 = vunpack.c.h.b16 %v739
      %v944 = vunpack.c.l.b16 %v740
      %v945 = vunpack.c.h.b16 %v740
      %v946 = vunpack.c.l.b16 %v741
      %v947 = vunpack.c.h.b16 %v741
      %v948 = vunpack.c.l.b16 %v742
      %v949 = vunpack.c.h.b16 %v742
      %v950 = vunpack.c.l.b16 %v743
      %v951 = vunpack.c.h.b16 %v743
      %v952 = vunpack.c.l.b16 %v744
      %v953 = vunpack.c.h.b16 %v744
      %v954 = vunpack.c.l.b16 %v745
      %v955 = vunpack.c.h.b16 %v745
      %v956 = vunpack.c.l.b16 %v746
      %v957 = vunpack.c.h.b16 %v746
      %v958 = vunpack.c.l.b16 %v747
      %v959 = vunpack.c.h.b16 %v747
      %v960 = vunpack.c.l.b16 %v748
      %v961 = vunpack.c.h.b16 %v748
      %v962 = vunpack.c.l.b16 %v749
      %v963 = vunpack.c.h.b16 %v749
      %v964 = vunpack.c.l.b16 %v750
      %v965 = vunpack.c.h.b16 %v750
      %v966 = vunpack.c.l.b16 %v751
      %v967 = vunpack.c.h.b16 %v751
      %v968 = vunpack.c.l.b16 %v752
      %v969 = vunpack.c.h.b16 %v752
      %v970 = vunpack.c.l.b16 %v753
      %v971 = vunpack.c.h.b16 %v753
      %v972 = vunpack.c.l.b16 %v754
      %v973 = vunpack.c.h.b16 %v754
      %v974 = vunpack.c.l.b16 %v755
      %v975 = vunpack.c.h.b16 %v755
      %v976 = vunpack.c.l.b16 %v756
      %v977 = vunpack.c.h.b16 %v756
      %v978 = vunpack.c.l.b16 %v757
      %v979 = vunpack.c.h.b16 %v757
      %v980 = vpack.c.b16 %v852, %v836
      %v981 = vpack.c.b16 %v853, %v837
      %v982 = vpack.c.b16 %v854, %v838
      %v983 = vpack.c.b16 %v855, %v839
      %v984 = vpack.c.b16 %v856, %v840
      %v985 = vpack.c.b16 %v857, %v841
      %v986 = vpack.c.b16 %v858, %v842
      %v987 = vpack.c.b16 %v859, %v843
      %v988 = vpack.c.b16 %v860, %v844
      %v989 = vpack.c.b16 %v861, %v845
      %v990 = vpack.c.b16 %v862, %v846
      %v991 = vpack.c.b16 %v863, %v847
      %v992 = vpack.c.b16 %v864, %v848
      %v993 = vpack.c.b16 %v865, %v849
      %v994 = vpack.c.b16 %v866, %v850
      %v995 = vpack.c.b16 %v867, %v851
      %v996 = vpack.c.b16 %v884, %v868
      %v997 = vpack.c.b16 %v885, %v869
      %v998 = vpack.c.b16 %v886, %v870
      %v999 = vpack.c.b16 %v887, %v871
      %v1000 = vpack.c.b16 %v888, %v872
      %v1001 = vpack.c.b16 %v889, %v873
      %v1002 = vpack.c.b16 %v890, %v874
      %v1003 = vpack.c.b16 %v891, %v875
      %v1004 = vpack.c.b16 %v892, %v876
      %v1005 = vpack.c.b16 %v893, %v877
      %v1006 = vpack.c.b16 %v894, %v878
      %v1007 = vpack.c.b16 %v895, %v879
      %v1008 = vpack.c.b16 %v896, %v880
      %v1009 = vpack.c.b16 %v897, %v881
      %v1010 = vpack.c.b16 %v898, %v882
      %v1011 = vpack.c.b16 %v899, %v883
      %v1012 = vpack.c.b16 %v916, %v900
      %v1013 = vpack.c.b16 %v917, %v901
      %v1014 = vpack.c.b16 %v918, %v902
      %v1015 = vpack.c.b16 %v919, %v903
      %v1016 = vpack.c.b16 %v920, %v904
      %v1017 = vpack.c.b16 %v921, %v905
      %v1018 = vpack.c.b16 %v922, %v906
      %v1019 = vpack.c.b16 %v923, %v907
      %v1020 = vpack.c.b16 %v924, %v908
      %v1021 = vpack.c.b16 %v925, %v909
      %v1022 = vpack.c.b16 %v926, %v910
      %v1023 = vpack.c.b16 %v927, %v911
      %v1024 = vpack.c.b16 %v928, %v912
      %v1025 = vpack.c.b16 %v929, %v913
      %v1026 = vpack.c.b16 %v930, %v914
      %v1027 = vpack.c.b16 %v931, %v915
      %v1028 = vpack.c.b16 %v948, %v932
      %v1029 = vpack.c.b16 %v949, %v933
      %v1030 = vpack.c.b16 %v950, %v934
      %v1031 = vpack.c.b16 %v951, %v935
      %v1032 = vpack.c.b16 %v952, %v936
      %v1033 = vpack.c.b16 %v953, %v937
      %v1034 = vpack.c.b16 %v954, %v938
      %v1035 = vpack.c.b16 %v955, %v939
      %v1036 = vpack.c.b16 %v956, %v940
      %v1037 = vpack.c.b16 %v957, %v941
      %v1038 = vpack.c.b16 %v958, %v942
      %v1039 = vpack.c.b16 %v959, %v943
      %v1040 = vpack.c.b16 %v960, %v944
      %v1041 = vpack.c.b16 %v961, %v945
      %v1042 = vpack.c.b16 %v962, %v946
      %v1043 = vpack.c.b16 %v963, %v947
      %v1044 = vpack.c.b16 %v964, %v964
      %v1045 = vpack.c.b16 %v965, %v965
      %v1046 = vpack.c.b16 %v966, %v966
      %v1047 = vpack.c.b16 %v967, %v967
      %v1048 = vpack.c.b16 %v968, %v968
      %v1049 = vpack.c.b16 %v969, %v969
      %v1050 = vpack.c.b16 %v970, %v970
      %v1051 = vpack.c.b16 %v971, %v971
      %v1052 = vpack.c.b16 %v972, %v972
      %v1053 = vpack.c.b16 %v973, %v973
      %v1054 = vpack.c.b16 %v974, %v974
      %v1055 = vpack.c.b16 %v975, %v975
      %v1056 = vpack.c.b16 %v976, %v976
      %v1057 = vpack.c.b16 %v977, %v977
      %v1058 = vpack.c.b16 %v978, %v978
      %v1059 = vpack.c.b16 %v979, %v979
      %vm1124 = vcmask 588800
      %v1126 = vsel %vm1124, %v685, 0
      %vm1128 = vcmask 1043456
      %v1130 = vsel %vm1128, %v1044, 0
      %v1133 = vsel %vm1128, %v1045, 0
      %v1136 = vsel %vm1128, %v1046, 0
      %v1139 = vsel %vm1128, %v1047, 0
      %v1142 = vsel %vm1128, %v1048, 0
      %v1145 = vsel %vm1128, %v1049, 0
      %v1148 = vsel %vm1128, %v1050, 0
      %v1151 = vsel %vm1128, %v1051, 0
      %v1154 = vsel %vm1128, %v1052, 0
      %v1157 = vsel %vm1128, %v1053, 0
      %v1160 = vsel %vm1128, %v1054, 0
      %v1163 = vsel %vm1128, %v1055, 0
      %v1166 = vsel %vm1128, %v1056, 0
      %v1169 = vsel %vm1128, %v1057, 0
      %v1172 = vsel %vm1128, %v1058, 0
      %v1175 = vsel %vm1128, %v1059, 0
      %1177 = vmatprep.subr.bf16.mxu0 %v981
      %1178 = vmatpush1.bf16.msra.mxu0 %v980
      %1179 = vmatprep.subr.bf16.mxu0 %v997
      %1180 = vmatpush1.bf16.msra.mxu0 %v996
      %1181 = vmatprep.subr.bf16.mxu0 %v1013
      %1182 = vmatpush1.bf16.msra.mxu0 %v1012
      %1183 = vmatprep.subr.bf16.mxu0 %v1029
      %1184 = vmatpush1.bf16.msra.mxu0 %v1028
      %1185 = vmatprep.subr.bf16.mxu0 %v1133
      %1186 = vmatpush1.bf16.msra.mxu0 %v1130
      %1187 = vmatprep.subr.bf16.mxu0 0
      %1188 = vmatpush1.bf16.msra.mxu0 0
      %1189 = vmatprep.subr.bf16.mxu0 0
      %1190 = vmatpush1.bf16.msra.mxu0 0
      %1191 = vmatprep.subr.bf16.mxu0 0
      %1192 = vmatpush1.bf16.msra.mxu0 0
      %1193 = vmatprep.subr.bf16.mxu0 0
      %1194 = vmatpush1.bf16.msra.mxu0 0
      %1195 = vmatprep.subr.bf16.mxu0 0
      %1196 = vmatpush1.bf16.msra.mxu0 0
      %1197 = vmatprep.subr.bf16.mxu0 0
      %1198 = vmatpush1.bf16.msra.mxu0 0
      %1199 = vmatprep.subr.bf16.mxu0 0
      %1200 = vmatpush1.bf16.msra.mxu0 0
      %1201 = vmatprep.subr.bf16.mxu0 0
      %1202 = vmatpush1.bf16.msra.mxu0 0
      %1203 = vmatprep.subr.bf16.mxu0 0
      %1204 = vmatpush1.bf16.msra.mxu0 0
      %1205 = vmatprep.subr.bf16.mxu0 0
      %1206 = vmatpush1.bf16.msra.mxu0 0
      %1207 = vmatprep.subr.bf16.mxu0 0
      %1208 = vmatpush1.bf16.msra.mxu0 0
      %1209 = vmatprep.mubr.bf16.mxu0 0
      %1210 = vmatmul.mubr.bf16.gmra.mrb[0].mxu0 %v1126
      %v1211 = vpop.f32.mrb[0].mxu0
      %v1212 = vadd.f32 %v762, %v1211
      %v1213 = vpop.f32.mrb[0].mxu0
      %v1214 = vadd.f32 %v762, %v1213
      %v1215 = vpop.f32.mrb[0].mxu0
      %v1216 = vpop.f32.mrb[0].mxu0
      %1217 = vdwg.mxu0
      %1218 = vmatprep.subr.bf16.mxu0 %v983
      %1219 = vmatpush1.bf16.msra.mxu0 %v982
      %1220 = vmatprep.subr.bf16.mxu0 %v999
      %1221 = vmatpush1.bf16.msra.mxu0 %v998
      %1222 = vmatprep.subr.bf16.mxu0 %v1015
      %1223 = vmatpush1.bf16.msra.mxu0 %v1014
      %1224 = vmatprep.subr.bf16.mxu0 %v1031
      %1225 = vmatpush1.bf16.msra.mxu0 %v1030
      %1226 = vmatprep.subr.bf16.mxu0 %v1139
      %1227 = vmatpush1.bf16.msra.mxu0 %v1136
      %1228 = vmatprep.subr.bf16.mxu0 0
      %1229 = vmatpush1.bf16.msra.mxu0 0
      %1230 = vmatprep.subr.bf16.mxu0 0
      %1231 = vmatpush1.bf16.msra.mxu0 0
      %1232 = vmatprep.subr.bf16.mxu0 0
      %1233 = vmatpush1.bf16.msra.mxu0 0
      %1234 = vmatprep.subr.bf16.mxu0 0
      %1235 = vmatpush1.bf16.msra.mxu0 0
      %1236 = vmatprep.subr.bf16.mxu0 0
      %1237 = vmatpush1.bf16.msra.mxu0 0
      %1238 = vmatprep.subr.bf16.mxu0 0
      %1239 = vmatpush1.bf16.msra.mxu0 0
      %1240 = vmatprep.subr.bf16.mxu0 0
      %1241 = vmatpush1.bf16.msra.mxu0 0
      %1242 = vmatprep.subr.bf16.mxu0 0
      %1243 = vmatpush1.bf16.msra.mxu0 0
      %1244 = vmatprep.subr.bf16.mxu0 0
      %1245 = vmatpush1.bf16.msra.mxu0 0
      %1246 = vmatprep.subr.bf16.mxu0 0
      %1247 = vmatpush1.bf16.msra.mxu0 0
      %1248 = vmatprep.subr.bf16.mxu0 0
      %1249 = vmatpush1.bf16.msra.mxu0 0
      %1250 = vmatprep.mubr.bf16.mxu0 0
      %1251 = vmatmul.mubr.bf16.gmra.mrb[0].mxu0 %v1126
      %v1252 = vpop.f32.mrb[0].mxu0
      %v1253 = vadd.f32 %v762, %v1252
      %v1254 = vpop.f32.mrb[0].mxu0
      %v1255 = vadd.f32 %v762, %v1254
      %v1256 = vpop.f32.mrb[0].mxu0
      %v1257 = vpop.f32.mrb[0].mxu0
      %1258 = vdwg.mxu0
      %1259 = vmatprep.subr.bf16.mxu0 %v985
      %1260 = vmatpush1.bf16.msra.mxu0 %v984
      %1261 = vmatprep.subr.bf16.mxu0 %v1001
      %1262 = vmatpush1.bf16.msra.mxu0 %v1000
      %1263 = vmatprep.subr.bf16.mxu0 %v1017
      %1264 = vmatpush1.bf16.msra.mxu0 %v1016
      %1265 = vmatprep.subr.bf16.mxu0 %v1033
      %1266 = vmatpush1.bf16.msra.mxu0 %v1032
      %1267 = vmatprep.subr.bf16.mxu0 %v1145
      %1268 = vmatpush1.bf16.msra.mxu0 %v1142
      %1269 = vmatprep.subr.bf16.mxu0 0
      %1270 = vmatpush1.bf16.msra.mxu0 0
      %1271 = vmatprep.subr.bf16.mxu0 0
      %1272 = vmatpush1.bf16.msra.mxu0 0
      %1273 = vmatprep.subr.bf16.mxu0 0
      %1274 = vmatpush1.bf16.msra.mxu0 0
      %1275 = vmatprep.subr.bf16.mxu0 0
      %1276 = vmatpush1.bf16.msra.mxu0 0
      %1277 = vmatprep.subr.bf16.mxu0 0
      %1278 = vmatpush1.bf16.msra.mxu0 0
      %1279 = vmatprep.subr.bf16.mxu0 0
      %1280 = vmatpush1.bf16.msra.mxu0 0
      %1281 = vmatprep.subr.bf16.mxu0 0
      %1282 = vmatpush1.bf16.msra.mxu0 0
      %1283 = vmatprep.subr.bf16.mxu0 0
      %1284 = vmatpush1.bf16.msra.mxu0 0
      %1285 = vmatprep.subr.bf16.mxu0 0
      %1286 = vmatpush1.bf16.msra.mxu0 0
      %1287 = vmatprep.subr.bf16.mxu0 0
      %1288 = vmatpush1.bf16.msra.mxu0 0
      %1289 = vmatprep.subr.bf16.mxu0 0
      %1290 = vmatpush1.bf16.msra.mxu0 0
      %1291 = vmatprep.mubr.bf16.mxu0 0
      %1292 = vmatmul.mubr.bf16.gmra.mrb[0].mxu0 %v1126
      %v1293 = vpop.f32.mrb[0].mxu0
      %v1294 = vadd.f32 %v762, %v1293
      %v1295 = vpop.f32.mrb[0].mxu0
      %v1296 = vadd.f32 %v762, %v1295
      %v1297 = vpop.f32.mrb[0].mxu0
      %v1298 = vpop.f32.mrb[0].mxu0
      %1299 = vdwg.mxu0
      %1300 = vmatprep.subr.bf16.mxu0 %v987
      %1301 = vmatpush1.bf16.msra.mxu0 %v986
      %1302 = vmatprep.subr.bf16.mxu0 %v1003
      %1303 = vmatpush1.bf16.msra.mxu0 %v1002
      %1304 = vmatprep.subr.bf16.mxu0 %v1019
      %1305 = vmatpush1.bf16.msra.mxu0 %v1018
      %1306 = vmatprep.subr.bf16.mxu0 %v1035
      %1307 = vmatpush1.bf16.msra.mxu0 %v1034
      %1308 = vmatprep.subr.bf16.mxu0 %v1151
      %1309 = vmatpush1.bf16.msra.mxu0 %v1148
      %1310 = vmatprep.subr.bf16.mxu0 0
      %1311 = vmatpush1.bf16.msra.mxu0 0
      %1312 = vmatprep.subr.bf16.mxu0 0
      %1313 = vmatpush1.bf16.msra.mxu0 0
      %1314 = vmatprep.subr.bf16.mxu0 0
      %1315 = vmatpush1.bf16.msra.mxu0 0
      %1316 = vmatprep.subr.bf16.mxu0 0
      %1317 = vmatpush1.bf16.msra.mxu0 0
      %1318 = vmatprep.subr.bf16.mxu0 0
      %1319 = vmatpush1.bf16.msra.mxu0 0
      %1320 = vmatprep.subr.bf16.mxu0 0
      %1321 = vmatpush1.bf16.msra.mxu0 0
      %1322 = vmatprep.subr.bf16.mxu0 0
      %1323 = vmatpush1.bf16.msra.mxu0 0
      %1324 = vmatprep.subr.bf16.mxu0 0
      %1325 = vmatpush1.bf16.msra.mxu0 0
      %1326 = vmatprep.subr.bf16.mxu0 0
      %1327 = vmatpush1.bf16.msra.mxu0 0
      %1328 = vmatprep.subr.bf16.mxu0 0
      %1329 = vmatpush1.bf16.msra.mxu0 0
      %1330 = vmatprep.subr.bf16.mxu0 0
      %1331 = vmatpush1.bf16.msra.mxu0 0
      %1332 = vmatprep.mubr.bf16.mxu0 0
      %1333 = vmatmul.mubr.bf16.gmra.mrb[0].mxu0 %v1126
      %v1334 = vpop.f32.mrb[0].mxu0
      %v1335 = vadd.f32 %v762, %v1334
      %v1336 = vpop.f32.mrb[0].mxu0
      %v1337 = vadd.f32 %v762, %v1336
      %v1338 = vpop.f32.mrb[0].mxu0
      %v1339 = vpop.f32.mrb[0].mxu0
      %1340 = vdwg.mxu0
      %1341 = vmatprep.subr.bf16.mxu0 %v989
      %1342 = vmatpush1.bf16.msra.mxu0 %v988
      %1343 = vmatprep.subr.bf16.mxu0 %v1005
      %1344 = vmatpush1.bf16.msra.mxu0 %v1004
      %1345 = vmatprep.subr.bf16.mxu0 %v1021
      %1346 = vmatpush1.bf16.msra.mxu0 %v1020
      %1347 = vmatprep.subr.bf16.mxu0 %v1037
      %1348 = vmatpush1.bf16.msra.mxu0 %v1036
      %1349 = vmatprep.subr.bf16.mxu0 %v1157
      %1350 = vmatpush1.bf16.msra.mxu0 %v1154
      %1351 = vmatprep.subr.bf16.mxu0 0
      %1352 = vmatpush1.bf16.msra.mxu0 0
      %1353 = vmatprep.subr.bf16.mxu0 0
      %1354 = vmatpush1.bf16.msra.mxu0 0
      %1355 = vmatprep.subr.bf16.mxu0 0
      %1356 = vmatpush1.bf16.msra.mxu0 0
      %1357 = vmatprep.subr.bf16.mxu0 0
      %1358 = vmatpush1.bf16.msra.mxu0 0
      %1359 = vmatprep.subr.bf16.mxu0 0
      %1360 = vmatpush1.bf16.msra.mxu0 0
      %1361 = vmatprep.subr.bf16.mxu0 0
      %1362 = vmatpush1.bf16.msra.mxu0 0
      %1363 = vmatprep.subr.bf16.mxu0 0
      %1364 = vmatpush1.bf16.msra.mxu0 0
      %1365 = vmatprep.subr.bf16.mxu0 0
      %1366 = vmatpush1.bf16.msra.mxu0 0
      %1367 = vmatprep.subr.bf16.mxu0 0
      %1368 = vmatpush1.bf16.msra.mxu0 0
      %1369 = vmatprep.subr.bf16.mxu0 0
      %1370 = vmatpush1.bf16.msra.mxu0 0
      %1371 = vmatprep.subr.bf16.mxu0 0
      %1372 = vmatpush1.bf16.msra.mxu0 0
      %1373 = vmatprep.mubr.bf16.mxu0 0
      %1374 = vmatmul.mubr.bf16.gmra.mrb[0].mxu0 %v1126
      %v1375 = vpop.f32.mrb[0].mxu0
      %v1376 = vadd.f32 %v762, %v1375
      %v1377 = vpop.f32.mrb[0].mxu0
      %v1378 = vadd.f32 %v762, %v1377
      %v1379 = vpop.f32.mrb[0].mxu0
      %v1380 = vpop.f32.mrb[0].mxu0
      %1381 = vdwg.mxu0
      %1382 = vmatprep.subr.bf16.mxu0 %v991
      %1383 = vmatpush1.bf16.msra.mxu0 %v990
      %1384 = vmatprep.subr.bf16.mxu0 %v1007
      %1385 = vmatpush1.bf16.msra.mxu0 %v1006
      %1386 = vmatprep.subr.bf16.mxu0 %v1023
      %1387 = vmatpush1.bf16.msra.mxu0 %v1022
      %1388 = vmatprep.subr.bf16.mxu0 %v1039
      %1389 = vmatpush1.bf16.msra.mxu0 %v1038
      %1390 = vmatprep.subr.bf16.mxu0 %v1163
      %1391 = vmatpush1.bf16.msra.mxu0 %v1160
      %1392 = vmatprep.subr.bf16.mxu0 0
      %1393 = vmatpush1.bf16.msra.mxu0 0
      %1394 = vmatprep.subr.bf16.mxu0 0
      %1395 = vmatpush1.bf16.msra.mxu0 0
      %1396 = vmatprep.subr.bf16.mxu0 0
      %1397 = vmatpush1.bf16.msra.mxu0 0
      %1398 = vmatprep.subr.bf16.mxu0 0
      %1399 = vmatpush1.bf16.msra.mxu0 0
      %1400 = vmatprep.subr.bf16.mxu0 0
      %1401 = vmatpush1.bf16.msra.mxu0 0
      %1402 = vmatprep.subr.bf16.mxu0 0
      %1403 = vmatpush1.bf16.msra.mxu0 0
      %1404 = vmatprep.subr.bf16.mxu0 0
      %1405 = vmatpush1.bf16.msra.mxu0 0
      %1406 = vmatprep.subr.bf16.mxu0 0
      %1407 = vmatpush1.bf16.msra.mxu0 0
      %1408 = vmatprep.subr.bf16.mxu0 0
      %1409 = vmatpush1.bf16.msra.mxu0 0
      %1410 = vmatprep.subr.bf16.mxu0 0
      %1411 = vmatpush1.bf16.msra.mxu0 0
      %1412 = vmatprep.subr.bf16.mxu0 0
      %1413 = vmatpush1.bf16.msra.mxu0 0
      %1414 = vmatprep.mubr.bf16.mxu0 0
      %1415 = vmatmul.mubr.bf16.gmra.mrb[0].mxu0 %v1126
      %v1416 = vpop.f32.mrb[0].mxu0
      %v1417 = vadd.f32 %v762, %v1416
      %v1418 = vpop.f32.mrb[0].mxu0
      %v1419 = vadd.f32 %v762, %v1418
      %v1420 = vpop.f32.mrb[0].mxu0
      %v1421 = vpop.f32.mrb[0].mxu0
      %1422 = vdwg.mxu0
      %1423 = vmatprep.subr.bf16.mxu0 %v993
      %1424 = vmatpush1.bf16.msra.mxu0 %v992
      %1425 = vmatprep.subr.bf16.mxu0 %v1009
      %1426 = vmatpush1.bf16.msra.mxu0 %v1008
      %1427 = vmatprep.subr.bf16.mxu0 %v1025
      %1428 = vmatpush1.bf16.msra.mxu0 %v1024
      %1429 = vmatprep.subr.bf16.mxu0 %v1041
      %1430 = vmatpush1.bf16.msra.mxu0 %v1040
      %1431 = vmatprep.subr.bf16.mxu0 %v1169
      %1432 = vmatpush1.bf16.msra.mxu0 %v1166
      %1433 = vmatprep.subr.bf16.mxu0 0
      %1434 = vmatpush1.bf16.msra.mxu0 0
      %1435 = vmatprep.subr.bf16.mxu0 0
      %1436 = vmatpush1.bf16.msra.mxu0 0
      %1437 = vmatprep.subr.bf16.mxu0 0
      %1438 = vmatpush1.bf16.msra.mxu0 0
      %1439 = vmatprep.subr.bf16.mxu0 0
      %1440 = vmatpush1.bf16.msra.mxu0 0
      %1441 = vmatprep.subr.bf16.mxu0 0
      %1442 = vmatpush1.bf16.msra.mxu0 0
      %1443 = vmatprep.subr.bf16.mxu0 0
      %1444 = vmatpush1.bf16.msra.mxu0 0
      %1445 = vmatprep.subr.bf16.mxu0 0
      %1446 = vmatpush1.bf16.msra.mxu0 0
      %1447 = vmatprep.subr.bf16.mxu0 0
      %1448 = vmatpush1.bf16.msra.mxu0 0
      %1449 = vmatprep.subr.bf16.mxu0 0
      %1450 = vmatpush1.bf16.msra.mxu0 0
      %1451 = vmatprep.subr.bf16.mxu0 0
      %1452 = vmatpush1.bf16.msra.mxu0 0
      %1453 = vmatprep.subr.bf16.mxu0 0
      %1454 = vmatpush1.bf16.msra.mxu0 0
      %1455 = vmatprep.mubr.bf16.mxu0 0
      %1456 = vmatmul.mubr.bf16.gmra.mrb[0].mxu0 %v1126
      %v1457 = vpop.f32.mrb[0].mxu0
      %v1458 = vadd.f32 %v762, %v1457
      %v1459 = vpop.f32.mrb[0].mxu0
      %v1460 = vadd.f32 %v762, %v1459
      %v1461 = vpop.f32.mrb[0].mxu0
      %v1462 = vpop.f32.mrb[0].mxu0
      %1463 = vdwg.mxu0
      %1464 = vmatprep.subr.bf16.mxu0 %v995
      %1465 = vmatpush1.bf16.msra.mxu0 %v994
      %1466 = vmatprep.subr.bf16.mxu0 %v1011
      %1467 = vmatpush1.bf16.msra.mxu0 %v1010
      %1468 = vmatprep.subr.bf16.mxu0 %v1027
      %1469 = vmatpush1.bf16.msra.mxu0 %v1026
      %1470 = vmatprep.subr.bf16.mxu0 %v1043
      %1471 = vmatpush1.bf16.msra.mxu0 %v1042
      %1472 = vmatprep.subr.bf16.mxu0 %v1175
      %1473 = vmatpush1.bf16.msra.mxu0 %v1172
      %1474 = vmatprep.subr.bf16.mxu0 0
      %1475 = vmatpush1.bf16.msra.mxu0 0
      %1476 = vmatprep.subr.bf16.mxu0 0
      %1477 = vmatpush1.bf16.msra.mxu0 0
      %1478 = vmatprep.subr.bf16.mxu0 0
      %1479 = vmatpush1.bf16.msra.mxu0 0
      %1480 = vmatprep.subr.bf16.mxu0 0
      %1481 = vmatpush1.bf16.msra.mxu0 0
      %1482 = vmatprep.subr.bf16.mxu0 0
      %1483 = vmatpush1.bf16.msra.mxu0 0
      %1484 = vmatprep.subr.bf16.mxu0 0
      %1485 = vmatpush1.bf16.msra.mxu0 0
      %1486 = vmatprep.subr.bf16.mxu0 0
      %1487 = vmatpush1.bf16.msra.mxu0 0
      %1488 = vmatprep.subr.bf16.mxu0 0
      %1489 = vmatpush1.bf16.msra.mxu0 0
      %1490 = vmatprep.subr.bf16.mxu0 0
      %1491 = vmatpush1.bf16.msra.mxu0 0
      %1492 = vmatprep.subr.bf16.mxu0 0
      %1493 = vmatpush1.bf16.msra.mxu0 0
      %1494 = vmatprep.subr.bf16.mxu0 0
      %1495 = vmatpush1.bf16.msra.mxu0 0
      %1496 = vmatprep.mubr.bf16.mxu0 0
      %1497 = vmatmul.mubr.bf16.gmra.mrb[0].mxu0 %v1126
      %v1498 = vpop.f32.mrb[0].mxu0
      %v1499 = vadd.f32 %v762, %v1498
      %v1500 = vpop.f32.mrb[0].mxu0
      %v1501 = vadd.f32 %v762, %v1500
      %v1502 = vpop.f32.mrb[0].mxu0
      %v1503 = vpop.f32.mrb[0].mxu0
      %1504 = vdwg.mxu0
      %1505 = vst [vmem:[%s170] sm:$0xff] %v1212
      %1506 = vst [vmem:[%s170 + $0x8] sm:$0xff] %v1214
      %1507 = vst [vmem:[%s170 + $0x10] sm:$0xff] %v1253
      %1508 = vst [vmem:[%s170 + $0x18] sm:$0xff] %v1255
      %1509 = vst [vmem:[%s170 + $0x20] sm:$0xff] %v1294
      %1510 = vst [vmem:[%s170 + $0x28] sm:$0xff] %v1296
      %1511 = vst [vmem:[%s170 + $0x30] sm:$0xff] %v1335
      %1512 = vst [vmem:[%s170 + $0x38] sm:$0xff] %v1337
      %1513 = vst [vmem:[%s170 + $0x40] sm:$0xff] %v1376
      %1514 = vst [vmem:[%s170 + $0x48] sm:$0xff] %v1378
      %1515 = vst [vmem:[%s170 + $0x50] sm:$0xff] %v1417
      %1516 = vst [vmem:[%s170 + $0x58] sm:$0xff] %v1419
      %1517 = vst [vmem:[%s170 + $0x60] sm:$0xff] %v1458
      %1518 = vst [vmem:[%s170 + $0x68] sm:$0xff] %v1460
      %1519 = vst [vmem:[%s170 + $0x70] sm:$0xff] %v1499
      %1520 = vst [vmem:[%s170 + $0x78] sm:$0xff] %v1501
      %p1521 = scmp.lt.s32.totalorder %s14, 1
      %s1522 = scalar_select %p1521, %s14, 1
      %s1523 = smul.addr %s1522, 16
      %s1524 = smul.addr %s1523, 8
      %s1525 = scalar_lea.vmem %s3, %s1524
      // Predicated region
      $region33: #{conv_layer_forward.1} parent=31 // pred_check
        %p1526 = pneg %p100
      $region34: #{conv_layer_forward.1} parent=31 // pred_check_branch
        %1528 = sbr.rel (%p1526) target = $region36
      $region35: #{conv_layer_forward.1} parent=31 // pred_region
        _
      $region36: #{conv_layer_forward.1} parent=31 // pred_fallthru
        _
    $region32: #{conv_layer_forward.1} parent=5 // pred_fallthru
      _
    %p1529 = scmp.le.s32.totalorder 2, %s9
    // Predicated region
    $region37: #{conv_layer_forward.1} parent=5 // pred_check
      %p1530 = pneg %p1529
    $region38: #{conv_layer_forward.1} parent=5 // pred_check_branch
      %1532 = sbr.rel (%p1530) target = $region40
    $region39: #{conv_layer_forward.1} parent=5 // pred_region
      %s1533 = ssub.s32 %s9, 2
      // Predicated region
      $region41: #{conv_layer_forward.1} parent=39 // pred_check
        %p1534 = pneg %p106
      $region42: #{conv_layer_forward.1} parent=39 // pred_check_branch
        %1536 = sbr.rel (%p1534) target = $region44
      $region43: #{conv_layer_forward.1} parent=39 // pred_region
        %p1537 = scmp.lt.s32.totalorder %s15, 1
        %s1538 = scalar_select %p1537, %s15, 1
        %s1539 = smul.addr %s1538, 16
        %s1540 = smul.addr %s1539, 8
        %s1541 = scalar_lea.vmem %s3, %s1540
      $region44: #{conv_layer_forward.1} parent=39 // pred_fallthru
        _
    $region40: #{conv_layer_forward.1} parent=5 // pred_fallthru
      _
  $region6: #{conv_layer_forward.1} parent=0 // loop_footer
    %s13 = sadd.s32 1, %s9
  $region7: #{conv_layer_forward.1} parent=0 // loop_footer_branch
    %8 = sbr.rel target = $region3
  $region8: #{conv_layer_forward.1} parent=0 // loop_exit
    _

</llo_original>
